<compile_context>
chip_gen: v5e
topology: v5e:2x2
jax: 0.10.0
libtpu: 0.0.40
codegen_flags: <defaults>
</compile_context>

<pallas_src>
import jax
import jax.numpy as jnp
from jax import lax
from jax.experimental import pallas as pl
from jax.experimental.pallas import tpu as pltpu

POOL = 4        # pooling module assumed to be HealpixAvgPool(kernel_size=4)
BN_EPS = 1e-5   # nn.BatchNorm1d default eps


# ------------------------------ kernel factory ------------------------------

def _make_kernel(*, K, B, Cin, Cmid, Cout, V, TN, R):
    """Kernel over grid (P, R): P = 2*(K-1) Laplacian-application phases,
    R = V // TN lane (column) tiles of L^T."""
    nT = K - 2                      # intermediate T_k buffers per Cheb block
    n_per_channel = float(B * V)    # BatchNorm1d count per channel

    def kernel(lapT_ref, x0f_ref, x0b_ref, w1_ref, g1_ref, b1_ref,
               w2_ref, g2_ref, b2_ref, out_ref, y1f_ref, y1b_ref, *t_bufs):
        ta_f = list(t_bufs[0 * nT:1 * nT])   # block-1 T_k f32  (B*Cin,  V)
        ta_b = list(t_bufs[1 * nT:2 * nT])   # block-1 T_k bf16 (B*Cin,  V)
        tb_f = list(t_bufs[2 * nT:3 * nT])   # block-2 T_k f32  (B*Cmid, V)
        tb_b = list(t_bufs[3 * nT:4 * nT])   # block-2 T_k bf16 (B*Cmid, V)

        p = pl.program_id(0)                 # phase
        j = pl.program_id(1)                 # lane tile of L^T
        lap_tile = lapT_ref[...]             # (V, TN) bf16
        cols = pl.ds(pl.multiple_of(j * TN, TN), TN)

        def bn_relu_inplace(buf_f_ref, buf_b_ref, g_ref, bt_ref, C):
            # BatchNorm1d (training mode: biased batch stats over batch and
            # vertices) + ReLU, in place on a [B*C, V] batch-stacked buffer.
            # gamma/beta arrive pre-tiled to (B*C, 1); only the tiny
            # variance-derived scale is replicated across batch blocks here.
            y = buf_f_ref[...]                                   # (B*C, V) f32
            s = jnp.sum(y, axis=1, keepdims=True)                # (B*C, 1)
            mean_c = sum(s[b * C:(b + 1) * C, :] for b in range(B)) / n_per_channel
            mean_r = jnp.concatenate([mean_c] * B, axis=0)       # (B*C, 1)
            d = y - mean_r
            ss = jnp.sum(d * d, axis=1, keepdims=True)
            var_c = sum(ss[b * C:(b + 1) * C, :] for b in range(B)) / n_per_channel
            scale_r = g_ref[...] * jnp.concatenate(
                [lax.rsqrt(var_c + BN_EPS)] * B, axis=0)         # (B*C, 1)
            out = jnp.maximum(d * scale_r + bt_ref[...], 0.0)
            buf_f_ref[...] = out
            if buf_b_ref is not None:
                buf_b_ref[...] = out.astype(jnp.bfloat16)        # bf16 shadow

        def cheb_phase(k, chain_f, chain_b, dst_f, dst_b, w_ref, acc_ref):
            # T_k^T[:, cols] = (2*) T_{k-1}^T @ L^T[:, cols] (- T_{k-2}^T[:, cols])
            # LHS is the bf16 shadow of the FULL previous T (already cast).
            t = jnp.dot(chain_b[k - 1][...], lap_tile,
                        preferred_element_type=jnp.float32)      # (B*Cb, TN)
            if k >= 2:
                t = 2.0 * t - chain_f[k - 2][:, cols]
            t_b = t.astype(jnp.bfloat16)
            if dst_f is not None:
                dst_f[:, cols] = t                               # f32 for recurrence
                dst_b[:, cols] = t_b                             # bf16 for next matmul
            # Per-order accumulation into the (lane-dense) block output.
            contrib = jnp.dot(w_ref[k], t_b, preferred_element_type=jnp.float32)
            if k == 1:
                contrib = contrib + jnp.dot(w_ref[0], chain_b[0][:, cols],
                                            preferred_element_type=jnp.float32)
                acc_ref[:, cols] = contrib
            else:
                acc_ref[:, cols] += contrib

        # ---- Cheb block 1: Cin -> Cmid on the pooled, transposed input ----
        chain1_f = [x0f_ref] + ta_f          # chain[j] holds T_j (f32)
        chain1_b = [x0b_ref] + ta_b          # chain[j] holds T_j (bf16 shadow)
        for ph in range(K - 1):
            k = ph + 1
            last = (k == K - 1)

            @pl.when(p == ph)
            def _(k=k, last=last):
                cheb_phase(k, chain1_f, chain1_b,
                           None if last else ta_f[k - 1],
                           None if last else ta_b[k - 1],
                           w1_ref, y1f_ref)

        # ---- Cheb block 2: BN1+ReLU (once), Cmid -> Cout, BN2+ReLU (once) ----
        chain2_f = [y1f_ref] + tb_f
        chain2_b = [y1b_ref] + tb_b
        for ph2 in range(K - 1):
            ph = (K - 1) + ph2
            k = ph2 + 1
            last = (k == K - 1)

            @pl.when(p == ph)
            def _(k=k, last=last, first=(ph2 == 0)):
                if first:
                    @pl.when(j == 0)
                    def _():
                        bn_relu_inplace(y1f_ref, y1b_ref, g1_ref, b1_ref, Cmid)
                cheb_phase(k, chain2_f, chain2_b,
                           None if last else tb_f[k - 1],
                           None if last else tb_b[k - 1],
                           w2_ref, out_ref)
                if last:
                    @pl.when(j == R - 1)
                    def _():
                        bn_relu_inplace(out_ref, None, g2_ref, b2_ref, Cout)

    return kernel


# --------------------------------- wrapper -----------------------------------

def spherical_cheb_bn_pool2(x, lap, w1, g1, b1, w2, g2, b2, *, tn=None):
    B, Vin, Cin = x.shape
    assert Vin % POOL == 0, "vertex count must be divisible by the pool factor"
    V = Vin // POOL
    K, wc_in, Cmid = w1.shape
    K2, wc_mid, Cout = w2.shape
    assert (K2, wc_in, wc_mid) == (K, Cin, Cmid)
    assert lap.shape == (V, V)
    # TODO(synk): K == 1 (constant-only Chebyshev filter) would need a trivial
    # un-phased kernel; the module is normally used with K >= 2.
    assert K >= 2

    if tn is None:
        # Keep L^T fully VMEM-resident when its bf16 copy is small (one DMA for
        # the whole grid; matters most on v5e's low HBM BW).  Otherwise stream
        # lane tiles sized so the double-buffered tile stays well inside v7x's
        # 64 MiB VMEM.
        if V * V * 2 <= (12 << 20):
            tn = V
        else:
            tn = V   # fallback: resident even if large
            for cand in (2048, 1024, 512, 256, 128):
                if V % cand == 0 and 2 * V * cand * 2 <= (16 << 20):
                    tn = cand
                    break
    assert V % tn == 0 and (tn == V or tn % 128 == 0)
    R = V // tn
    P = 2 * (K - 1)
    f32 = jnp.float32
    bf16 = jnp.bfloat16

    # HealpixAvgPool (factor 4) + transpose to the lane-dense layout [B*Cin, V].
    xp = x.astype(f32).reshape(B, V, POOL, Cin).mean(axis=2)      # (B, V, Cin)
    x0 = jnp.transpose(xp, (0, 2, 1)).reshape(B * Cin, V)         # (B*Cin, V)
    x0_bf = x0.astype(bf16)

    # L^T so the recurrence is T_k^T = T_{k-1}^T @ L^T; bf16 MXU path.
    lapT_bf = jnp.swapaxes(lap, 0, 1).astype(bf16)

    # Block-diagonal-over-batch transposed weights, per Chebyshev order:
    #   W_blk[k, b*Cout + o, b'*Cin + c] = delta(b, b') * w[k, c, o]
    # so out^T = sum_k W_blk[k] @ T_k^T with T stacked as [B*C, V].
    # TODO(synk): for large B switch to a per-batch loop with plain (C, Cout)
    # weights to avoid the O(B^2) block-diagonal growth.
    eye_b = jnp.eye(B, dtype=f32)
    w1_blk = jnp.einsum('ab,kcd->kadbc', eye_b, w1.astype(f32)
                        ).reshape(K, B * Cmid, B * Cin).astype(bf16)
    w2_blk = jnp.einsum('ab,kcd->kadbc', eye_b, w2.astype(f32)
                        ).reshape(K, B * Cout, B * Cmid).astype(bf16)

    # BN affine params pre-tiled over batch to (B*C, 1) columns.
    g1r = jnp.tile(g1.astype(f32).reshape(Cmid, 1), (B, 1))
    b1r = jnp.tile(b1.astype(f32).reshape(Cmid, 1), (B, 1))
    g2r = jnp.tile(g2.astype(f32).reshape(Cout, 1), (B, 1))
    b2r = jnp.tile(b2.astype(f32).reshape(Cout, 1), (B, 1))

    def full_spec(shape):
        zero = (0,) * len(shape)
        return pl.BlockSpec(shape, lambda p, j, zero=zero: zero)

    grid_spec = pltpu.PrefetchScalarGridSpec(
        num_scalar_prefetch=0,
        grid=(P, R),
        in_specs=[pl.BlockSpec((V, tn), lambda p, j: (0, j)),   # L^T lane tiles
                  full_spec((B * Cin, V)),                      # x0 f32 (resident)
                  full_spec((B * Cin, V)),                      # x0 bf16 (resident)
                  full_spec((K, B * Cmid, B * Cin)),            # W1 blocks (bf16)
                  full_spec((B * Cmid, 1)), full_spec((B * Cmid, 1)),
                  full_spec((K, B * Cout, B * Cmid)),           # W2 blocks (bf16)
                  full_spec((B * Cout, 1)), full_spec((B * Cout, 1))],
        out_specs=full_spec((B * Cout, V)),    # resident, written back once
        scratch_shapes=(
            [pltpu.VMEM((B * Cmid, V), jnp.float32),            # y1 (f32)
             pltpu.VMEM((B * Cmid, V), jnp.bfloat16)]           # y1 bf16 shadow
            + [pltpu.VMEM((B * Cin, V), jnp.float32) for _ in range(K - 2)]
            + [pltpu.VMEM((B * Cin, V), jnp.bfloat16) for _ in range(K - 2)]
            + [pltpu.VMEM((B * Cmid, V), jnp.float32) for _ in range(K - 2)]
            + [pltpu.VMEM((B * Cmid, V), jnp.bfloat16) for _ in range(K - 2)]),
    )

    # Shape-derived VMEM budget (v7x only has 64 MiB physical); 2x margin for
    # sublane padding of narrow bf16 buffers, floored so tiny problems still
    # get a comfortable scoped budget.
    est = 0
    est += 2 * V * tn * 2                                  # L^T tile (2 bufs)
    est += (B * Cin) * V * (4 + 2)                         # x0 f32 + bf16
    est += 2 * K * (B * Cmid) * (B * Cin) * 2              # W1 blocks
    est += 2 * K * (B * Cout) * (B * Cmid) * 2             # W2 blocks
    est += 4 * (B * Cmid + B * Cout) * 4                   # gammas / betas
    est += 2 * (B * Cout) * V * 4                          # out block
    est += (B * Cmid) * V * (4 + 2)                        # y1 f32 + bf16
    est += (K - 2) * (B * Cin) * V * (4 + 2)               # block-1 T_k
    est += (K - 2) * (B * Cmid) * V * (4 + 2)              # block-2 T_k
    vmem_limit = int(min(max(2 * est + (8 << 20), 32 << 20), 100 << 20))

    out2d = pl.pallas_call(
        _make_kernel(K=K, B=B, Cin=Cin, Cmid=Cmid, Cout=Cout, V=V, TN=tn, R=R),
        out_shape=jax.ShapeDtypeStruct((B * Cout, V), jnp.float32),
        grid_spec=grid_spec,
        compiler_params=pltpu.CompilerParams(
            # Phases and lane tiles carry cross-step scratch dependencies, so
            # both axes stay sequential.
            # TODO(synk): a v7x megacore split of the lane-tile axis would need
            # a two-pass BN (per-core partial stats + combine) — not done here.
            dimension_semantics=("arbitrary", "arbitrary"),
            vmem_limit_bytes=vmem_limit),
    )(lapT_bf, x0, x0_bf, w1_blk, g1r, b1r, w2_blk, g2r, b2r)

    # Un-stack the lane-dense [B*Cout, V] slab back to [B, V, Cout].
    return jnp.transpose(out2d.reshape(B, Cout, V), (0, 2, 1))


# ---------------------------- pure-JAX reference -----------------------------

def reference(x, lap, w1, g1, b1, w2, g2, b2):
    B, Vin, Cin = x.shape
    V = Vin // POOL
    xp = x.reshape(B, V, POOL, Cin).mean(axis=2)

    def cheb(xx, w):
        K = w.shape[0]
        ts = [xx]
        if K > 1:
            ts.append(jnp.einsum('uv,bvc->buc', lap, xx))
        for _ in range(2, K):
            ts.append(2.0 * jnp.einsum('uv,bvc->buc', lap, ts[-1]) - ts[-2])
        return sum(jnp.einsum('bvc,cd->bvd', ts[k], w[k]) for k in range(K))

    def bn_relu(y, g, b):
        mean = y.mean(axis=(0, 1), keepdims=True)
        var = ((y - mean) ** 2).mean(axis=(0, 1), keepdims=True)
        return jnp.maximum((y - mean) * lax.rsqrt(var + BN_EPS)
                           * g.reshape(1, 1, -1) + b.reshape(1, 1, -1), 0.0)

    y = bn_relu(cheb(xp, w1), g1, b1)
    y = bn_relu(cheb(y, w2), g2, b2)
    return y


# ----------------------------------- main -------------------------------------

if __name__ == "__main__":
    B, Vin, Cin, Cmid, Cout, K = 2, 1024, 4, 8, 16, 3
    V = Vin // POOL                                   # 256 vertices after pool

    key = jax.random.PRNGKey(0)
    k1, k2, k3 = jax.random.split(key, 3)
    x = jax.random.normal(k1, (B, Vin, Cin), jnp.float32)

    # Deterministic "Laplacian": rescaled normalized Laplacian of a ring graph
    # on V vertices (DeepSphere rescales eigenvalues into ~[-1, 1]).
    idx = jnp.arange(V)
    A = (jnp.zeros((V, V), jnp.float32)
         .at[idx, (idx + 1) % V].set(1.0)
         .at[idx, (idx - 1) % V].set(1.0))
    lap = (jnp.eye(V, dtype=jnp.float32) - 0.5 * A) - jnp.eye(V, dtype=jnp.float32)

    # ChebConv weights (deterministic Kaiming-style init), shapes per module:
    #   conv1: (K, Cin, Cmid), conv2: (K, Cmid, Cout)
    w1 = ((2.0 / (Cin * K)) ** 0.5) * jax.random.normal(k2, (K, Cin, Cmid), jnp.float32)
    w2 = ((2.0 / (Cmid * K)) ** 0.5) * jax.random.normal(k3, (K, Cmid, Cout), jnp.float32)
    # Non-trivial BN affine parameters to exercise the per-channel path.
    g1 = 1.0 + 0.05 * jnp.arange(Cmid, dtype=jnp.float32)
    b1 = 0.10 * jnp.arange(Cmid, dtype=jnp.float32) - 0.3
    g2 = 1.0 + 0.03 * jnp.arange(Cout, dtype=jnp.float32)
    b2 = 0.05 * jnp.arange(Cout, dtype=jnp.float32) - 0.2

    # TODO(synk): `pooling` is a constructor argument of the PyTorch module;
    # HealpixAvgPool(kernel_size=4) average pooling is assumed here.
    out = jax.block_until_ready(
        spherical_cheb_bn_pool2(x, lap, w1, g1, b1, w2, g2, b2))
    ref = reference(x, lap, w1, g1, b1, w2, g2, b2)

    assert out.shape == (B, V, Cout), out.shape
    err = float(jnp.max(jnp.abs(out - ref)))
    # bf16 MXU operands (L, T shadows, weights) => small relative error.
    assert jnp.allclose(out, ref, atol=5e-2, rtol=5e-2), err
    print("KERNEL_OK")
</pallas_src>

<mosaic_0001>
module attributes {stable_mosaic.version = 11 : i64} {
  func.func @kernel(%arg0: i32, %arg1: i32, %arg2: memref<256x256xbf16, #tpu.memory_space<vmem>>, %arg3: memref<8x256xf32, #tpu.memory_space<vmem>>, %arg4: memref<8x256xbf16, #tpu.memory_space<vmem>>, %arg5: memref<3x16x8xbf16, #tpu.memory_space<vmem>>, %arg6: memref<16x1xf32, #tpu.memory_space<vmem>>, %arg7: memref<16x1xf32, #tpu.memory_space<vmem>>, %arg8: memref<3x32x16xbf16, #tpu.memory_space<vmem>>, %arg9: memref<32x1xf32, #tpu.memory_space<vmem>>, %arg10: memref<32x1xf32, #tpu.memory_space<vmem>>, %arg11: memref<32x256xf32, #tpu.memory_space<vmem>>, %arg12: memref<16x256xf32, #tpu.memory_space<vmem>>, %arg13: memref<16x256xbf16, #tpu.memory_space<vmem>>, %arg14: memref<8x256xf32, #tpu.memory_space<vmem>>, %arg15: memref<8x256xbf16, #tpu.memory_space<vmem>>, %arg16: memref<16x256xf32, #tpu.memory_space<vmem>>, %arg17: memref<16x256xbf16, #tpu.memory_space<vmem>>) attributes {dimension_semantics = [#tpu.dimension_semantics<arbitrary>, #tpu.dimension_semantics<arbitrary>], iteration_bounds = array<i64: 4, 1>, scalar_prefetch = 0 : i64, scratch_operands = 6 : i64, tpu.core_type = #tpu.core_type<tc>, window_params = [{transform_indices = @transform_0, window_bounds = array<i64: 256, 256>}, {pipeline_mode = #tpu.pipeline_mode<synchronous>, transform_indices = @transform_1, window_bounds = array<i64: 8, 256>}, {pipeline_mode = #tpu.pipeline_mode<synchronous>, transform_indices = @transform_2, window_bounds = array<i64: 8, 256>}, {pipeline_mode = #tpu.pipeline_mode<synchronous>, transform_indices = @transform_3, window_bounds = array<i64: 3, 16, 8>}, {pipeline_mode = #tpu.pipeline_mode<synchronous>, transform_indices = @transform_4, window_bounds = array<i64: 16, 1>}, {pipeline_mode = #tpu.pipeline_mode<synchronous>, transform_indices = @transform_5, window_bounds = array<i64: 16, 1>}, {pipeline_mode = #tpu.pipeline_mode<synchronous>, transform_indices = @transform_6, window_bounds = array<i64: 3, 32, 16>}, {pipeline_mode = #tpu.pipeline_mode<synchronous>, transform_indices = @transform_7, window_bounds = array<i64: 32, 1>}, {pipeline_mode = #tpu.pipeline_mode<synchronous>, transform_indices = @transform_8, window_bounds = array<i64: 32, 1>}, {pipeline_mode = #tpu.pipeline_mode<synchronous>, transform_indices = @transform_9, window_bounds = array<i64: 32, 256>}]} {
    %c0 = arith.constant 0 : index
    %c0_0 = arith.constant 0 : index
    %0 = vector.load %arg2[%c0, %c0_0] : memref<256x256xbf16, #tpu.memory_space<vmem>>, vector<256x256xbf16>
    %c256_i32 = arith.constant 256 : i32
    %1 = arith.muli %arg1, %c256_i32 : i32
    %2 = tpu.assume_multiple %1, 256 : i32
    %c0_i32 = arith.constant 0 : i32
    %3 = arith.cmpi eq, %arg0, %c0_i32 : i32
    %4 = arith.extui %3 : i1 to i32
    %c0_i32_1 = arith.constant 0 : i32
    %5 = arith.cmpi ne, %4, %c0_i32_1 : i32
    scf.if %5 {
      %c0_5 = arith.constant 0 : index
      %c0_6 = arith.constant 0 : index
      %15 = vector.load %arg4[%c0_5, %c0_6] : memref<8x256xbf16, #tpu.memory_space<vmem>>, vector<8x256xbf16>
      %cst = arith.constant dense<0.000000e+00> : vector<8x256xf32>
      %16 = tpu.matmul %15, %0, %cst {dimension_numbers = #tpu.dot_dimension_numbers<[1], [0], [0], [1], [0, 0, 1, 1], [], []>} : vector<8x256xbf16>, vector<256x256xbf16>, vector<8x256xf32> -> vector<8x256xf32>
      %17 = arith.truncf %16 : vector<8x256xf32> to vector<8x256xbf16>
      %c0_7 = arith.constant 0 : index
      %18 = arith.index_cast %2 : i32 to index
      %19 = vector.load %arg14[%c0_7, %18] : memref<8x256xf32, #tpu.memory_space<vmem>>, vector<8x256xf32>
      tpu.vector_store %arg14[%c0_7, %18], %16 {strides = array<i32>} : memref<8x256xf32, #tpu.memory_space<vmem>>, vector<8x256xf32>,
      %c0_8 = arith.constant 0 : index
      %20 = arith.index_cast %2 : i32 to index
      %21 = vector.load %arg15[%c0_8, %20] : memref<8x256xbf16, #tpu.memory_space<vmem>>, vector<8x256xbf16>
      tpu.vector_store %arg15[%c0_8, %20], %17 {strides = array<i32>} : memref<8x256xbf16, #tpu.memory_space<vmem>>, vector<8x256xbf16>,
      %c1 = arith.constant 1 : index
      %c0_9 = arith.constant 0 : index
      %c0_10 = arith.constant 0 : index
      %22 = vector.load %arg5[%c1, %c0_9, %c0_10] : memref<3x16x8xbf16, #tpu.memory_space<vmem>>, vector<1x16x8xbf16>
      %23 = vector.shape_cast %22 : vector<1x16x8xbf16> to vector<16x8xbf16>
      %cst_11 = arith.constant dense<0.000000e+00> : vector<16x256xf32>
      %24 = tpu.matmul %23, %17, %cst_11 {dimension_numbers = #tpu.dot_dimension_numbers<[1], [0], [0], [1], [0, 0, 1, 1], [], []>} : vector<16x8xbf16>, vector<8x256xbf16>, vector<16x256xf32> -> vector<16x256xf32>
      %c0_12 = arith.constant 0 : index
      %c0_13 = arith.constant 0 : index
      %c0_14 = arith.constant 0 : index
      %25 = vector.load %arg5[%c0_12, %c0_13, %c0_14] : memref<3x16x8xbf16, #tpu.memory_space<vmem>>, vector<1x16x8xbf16>
      %26 = vector.shape_cast %25 : vector<1x16x8xbf16> to vector<16x8xbf16>
      %c0_15 = arith.constant 0 : index
      %27 = arith.index_cast %2 : i32 to index
      %28 = vector.load %arg4[%c0_15, %27] : memref<8x256xbf16, #tpu.memory_space<vmem>>, vector<8x256xbf16>
      %cst_16 = arith.constant dense<0.000000e+00> : vector<16x256xf32>
      %29 = tpu.matmul %26, %28, %cst_16 {dimension_numbers = #tpu.dot_dimension_numbers<[1], [0], [0], [1], [0, 0, 1, 1], [], []>} : vector<16x8xbf16>, vector<8x256xbf16>, vector<16x256xf32> -> vector<16x256xf32>
      %30 = arith.addf %24, %29 : vector<16x256xf32>
      %c0_17 = arith.constant 0 : index
      %31 = arith.index_cast %2 : i32 to index
      %32 = vector.load %arg12[%c0_17, %31] : memref<16x256xf32, #tpu.memory_space<vmem>>, vector<16x256xf32>
      tpu.vector_store %arg12[%c0_17, %31], %30 {strides = array<i32>} : memref<16x256xf32, #tpu.memory_space<vmem>>, vector<16x256xf32>,
    } else {
    }
    %c1_i32 = arith.constant 1 : i32
    %6 = arith.cmpi eq, %arg0, %c1_i32 : i32
    %7 = arith.extui %6 : i1 to i32
    %c0_i32_2 = arith.constant 0 : i32
    %8 = arith.cmpi ne, %7, %c0_i32_2 : i32
    scf.if %8 {
      %c0_5 = arith.constant 0 : index
      %c0_6 = arith.constant 0 : index
      %15 = vector.load %arg15[%c0_5, %c0_6] : memref<8x256xbf16, #tpu.memory_space<vmem>>, vector<8x256xbf16>
      %cst = arith.constant dense<0.000000e+00> : vector<8x256xf32>
      %16 = tpu.matmul %15, %0, %cst {dimension_numbers = #tpu.dot_dimension_numbers<[1], [0], [0], [1], [0, 0, 1, 1], [], []>} : vector<8x256xbf16>, vector<256x256xbf16>, vector<8x256xf32> -> vector<8x256xf32>
      %cst_7 = arith.constant 2.000000e+00 : f32
      %17 = vector.broadcast %cst_7 : f32 to vector<8x256xf32>
      %18 = arith.mulf %17, %16 : vector<8x256xf32>
      %c0_8 = arith.constant 0 : index
      %19 = arith.index_cast %2 : i32 to index
      %20 = vector.load %arg3[%c0_8, %19] : memref<8x256xf32, #tpu.memory_space<vmem>>, vector<8x256xf32>
      %21 = arith.subf %18, %20 : vector<8x256xf32>
      %22 = arith.truncf %21 : vector<8x256xf32> to vector<8x256xbf16>
      %c2 = arith.constant 2 : index
      %c0_9 = arith.constant 0 : index
      %c0_10 = arith.constant 0 : index
      %23 = vector.load %arg5[%c2, %c0_9, %c0_10] : memref<3x16x8xbf16, #tpu.memory_space<vmem>>, vector<1x16x8xbf16>
      %24 = vector.shape_cast %23 : vector<1x16x8xbf16> to vector<16x8xbf16>
      %cst_11 = arith.constant dense<0.000000e+00> : vector<16x256xf32>
      %25 = tpu.matmul %24, %22, %cst_11 {dimension_numbers = #tpu.dot_dimension_numbers<[1], [0], [0], [1], [0, 0, 1, 1], [], []>} : vector<16x8xbf16>, vector<8x256xbf16>, vector<16x256xf32> -> vector<16x256xf32>
      %c0_12 = arith.constant 0 : index
      %26 = arith.index_cast %2 : i32 to index
      %27 = vector.load %arg12[%c0_12, %26] : memref<16x256xf32, #tpu.memory_space<vmem>>, vector<16x256xf32>
      %28 = arith.addf %27, %25 : vector<16x256xf32>
      %c0_13 = arith.constant 0 : index
      %29 = arith.index_cast %2 : i32 to index
      %30 = vector.load %arg12[%c0_13, %29] : memref<16x256xf32, #tpu.memory_space<vmem>>, vector<16x256xf32>
      tpu.vector_store %arg12[%c0_13, %29], %28 {strides = array<i32>} : memref<16x256xf32, #tpu.memory_space<vmem>>, vector<16x256xf32>,
    } else {
    }
    %c2_i32 = arith.constant 2 : i32
    %9 = arith.cmpi eq, %arg0, %c2_i32 : i32
    %10 = arith.extui %9 : i1 to i32
    %c0_i32_3 = arith.constant 0 : i32
    %11 = arith.cmpi ne, %10, %c0_i32_3 : i32
    scf.if %11 {
      %c0_i32_5 = arith.constant 0 : i32
      %15 = arith.cmpi eq, %arg1, %c0_i32_5 : i32
      %16 = arith.extui %15 : i1 to i32
      %c0_i32_6 = arith.constant 0 : i32
      %17 = arith.cmpi ne, %16, %c0_i32_6 : i32
      scf.if %17 {
        %c0_20 = arith.constant 0 : index
        %c0_21 = arith.constant 0 : index
        %36 = vector.load %arg12[%c0_20, %c0_21] : memref<16x256xf32, #tpu.memory_space<vmem>>, vector<16x256xf32>
        %cst_22 = arith.constant dense<0.000000e+00> : vector<16xf32>
        %37 = vector.multi_reduction <add>, %36, %cst_22 [1] : vector<16x256xf32> to vector<16xf32>
        %38 = vector.shape_cast %37 : vector<16xf32> to vector<16x1xf32>
        %39 = vector.extract_strided_slice %38 {offsets = [0, 0], sizes = [8, 1], strides = [1, 1]} : vector<16x1xf32> to vector<8x1xf32>
        %cst_23 = arith.constant 0.000000e+00 : f32
        %40 = vector.broadcast %cst_23 : f32 to vector<8x1xf32>
        %41 = arith.addf %40, %39 : vector<8x1xf32>
        %42 = vector.extract_strided_slice %38 {offsets = [8, 0], sizes = [8, 1], strides = [1, 1]} : vector<16x1xf32> to vector<8x1xf32>
        %43 = arith.addf %41, %42 : vector<8x1xf32>
        %cst_24 = arith.constant 5.120000e+02 : f32
        %44 = vector.broadcast %cst_24 : f32 to vector<8x1xf32>
        %45 = arith.divf %43, %44 : vector<8x1xf32>
        %46 = tpu.concatenate %45, %45 in 0 : vector<8x1xf32>, vector<8x1xf32> -> vector<16x1xf32>
        %47 = vector.broadcast %46 : vector<16x1xf32> to vector<16x256xf32>
        %48 = arith.subf %36, %47 : vector<16x256xf32>
        %49 = arith.mulf %48, %48 : vector<16x256xf32>
        %cst_25 = arith.constant dense<0.000000e+00> : vector<16xf32>
        %50 = vector.multi_reduction <add>, %49, %cst_25 [1] : vector<16x256xf32> to vector<16xf32>
        %51 = vector.shape_cast %50 : vector<16xf32> to vector<16x1xf32>
        %52 = vector.extract_strided_slice %51 {offsets = [0, 0], sizes = [8, 1], strides = [1, 1]} : vector<16x1xf32> to vector<8x1xf32>
        %cst_26 = arith.constant 0.000000e+00 : f32
        %53 = vector.broadcast %cst_26 : f32 to vector<8x1xf32>
        %54 = arith.addf %53, %52 : vector<8x1xf32>
        %55 = vector.extract_strided_slice %51 {offsets = [8, 0], sizes = [8, 1], strides = [1, 1]} : vector<16x1xf32> to vector<8x1xf32>
        %56 = arith.addf %54, %55 : vector<8x1xf32>
        %cst_27 = arith.constant 5.120000e+02 : f32
        %57 = vector.broadcast %cst_27 : f32 to vector<8x1xf32>
        %58 = arith.divf %56, %57 : vector<8x1xf32>
        %c0_28 = arith.constant 0 : index
        %c0_29 = arith.constant 0 : index
        %59 = vector.load %arg6[%c0_28, %c0_29] : memref<16x1xf32, #tpu.memory_space<vmem>>, vector<16x1xf32>
        %cst_30 = arith.constant 9.99999974E-6 : f32
        %60 = vector.broadcast %cst_30 : f32 to vector<8x1xf32>
        %61 = arith.addf %58, %60 : vector<8x1xf32>
        %62 = math.rsqrt %61 : vector<8x1xf32>
        %63 = tpu.concatenate %62, %62 in 0 : vector<8x1xf32>, vector<8x1xf32> -> vector<16x1xf32>
        %64 = arith.mulf %59, %63 : vector<16x1xf32>
        %65 = vector.broadcast %64 : vector<16x1xf32> to vector<16x256xf32>
        %66 = arith.mulf %48, %65 : vector<16x256xf32>
        %c0_31 = arith.constant 0 : index
        %c0_32 = arith.constant 0 : index
        %67 = vector.load %arg7[%c0_31, %c0_32] : memref<16x1xf32, #tpu.memory_space<vmem>>, vector<16x1xf32>
        %68 = vector.broadcast %67 : vector<16x1xf32> to vector<16x256xf32>
        %69 = arith.addf %66, %68 : vector<16x256xf32>
        %cst_33 = arith.constant 0.000000e+00 : f32
        %70 = vector.broadcast %cst_33 : f32 to vector<16x256xf32>
        %71 = arith.maximumf %69, %70 : vector<16x256xf32>
        %c0_34 = arith.constant 0 : index
        %c0_35 = arith.constant 0 : index
        %72 = vector.load %arg12[%c0_34, %c0_35] : memref<16x256xf32, #tpu.memory_space<vmem>>, vector<16x256xf32>
        tpu.vector_store %arg12[%c0_34, %c0_35], %71 {strides = array<i32>} : memref<16x256xf32, #tpu.memory_space<vmem>>, vector<16x256xf32>,
        %73 = arith.truncf %71 : vector<16x256xf32> to vector<16x256xbf16>
        %c0_36 = arith.constant 0 : index
        %c0_37 = arith.constant 0 : index
        %74 = vector.load %arg13[%c0_36, %c0_37] : memref<16x256xbf16, #tpu.memory_space<vmem>>, vector<16x256xbf16>
        tpu.vector_store %arg13[%c0_36, %c0_37], %73 {strides = array<i32>} : memref<16x256xbf16, #tpu.memory_space<vmem>>, vector<16x256xbf16>,
      } else {
      }
      %c0_7 = arith.constant 0 : index
      %c0_8 = arith.constant 0 : index
      %18 = vector.load %arg13[%c0_7, %c0_8] : memref<16x256xbf16, #tpu.memory_space<vmem>>, vector<16x256xbf16>
      %cst = arith.constant dense<0.000000e+00> : vector<16x256xf32>
      %19 = tpu.matmul %18, %0, %cst {dimension_numbers = #tpu.dot_dimension_numbers<[1], [0], [0], [1], [0, 0, 1, 1], [], []>} : vector<16x256xbf16>, vector<256x256xbf16>, vector<16x256xf32> -> vector<16x256xf32>
      %20 = arith.truncf %19 : vector<16x256xf32> to vector<16x256xbf16>
      %c0_9 = arith.constant 0 : index
      %21 = arith.index_cast %2 : i32 to index
      %22 = vector.load %arg16[%c0_9, %21] : memref<16x256xf32, #tpu.memory_space<vmem>>, vector<16x256xf32>
      tpu.vector_store %arg16[%c0_9, %21], %19 {strides = array<i32>} : memref<16x256xf32, #tpu.memory_space<vmem>>, vector<16x256xf32>,
      %c0_10 = arith.constant 0 : index
      %23 = arith.index_cast %2 : i32 to index
      %24 = vector.load %arg17[%c0_10, %23] : memref<16x256xbf16, #tpu.memory_space<vmem>>, vector<16x256xbf16>
      tpu.vector_store %arg17[%c0_10, %23], %20 {strides = array<i32>} : memref<16x256xbf16, #tpu.memory_space<vmem>>, vector<16x256xbf16>,
      %c1 = arith.constant 1 : index
      %c0_11 = arith.constant 0 : index
      %c0_12 = arith.constant 0 : index
      %25 = vector.load %arg8[%c1, %c0_11, %c0_12] : memref<3x32x16xbf16, #tpu.memory_space<vmem>>, vector<1x32x16xbf16>
      %26 = vector.shape_cast %25 : vector<1x32x16xbf16> to vector<32x16xbf16>
      %cst_13 = arith.constant dense<0.000000e+00> : vector<32x256xf32>
      %27 = tpu.matmul %26, %20, %cst_13 {dimension_numbers = #tpu.dot_dimension_numbers<[1], [0], [0], [1], [0, 0, 1, 1], [], []>} : vector<32x16xbf16>, vector<16x256xbf16>, vector<32x256xf32> -> vector<32x256xf32>
      %c0_14 = arith.constant 0 : index
      %c0_15 = arith.constant 0 : index
      %c0_16 = arith.constant 0 : index
      %28 = vector.load %arg8[%c0_14, %c0_15, %c0_16] : memref<3x32x16xbf16, #tpu.memory_space<vmem>>, vector<1x32x16xbf16>
      %29 = vector.shape_cast %28 : vector<1x32x16xbf16> to vector<32x16xbf16>
      %c0_17 = arith.constant 0 : index
      %30 = arith.index_cast %2 : i32 to index
      %31 = vector.load %arg13[%c0_17, %30] : memref<16x256xbf16, #tpu.memory_space<vmem>>, vector<16x256xbf16>
      %cst_18 = arith.constant dense<0.000000e+00> : vector<32x256xf32>
      %32 = tpu.matmul %29, %31, %cst_18 {dimension_numbers = #tpu.dot_dimension_numbers<[1], [0], [0], [1], [0, 0, 1, 1], [], []>} : vector<32x16xbf16>, vector<16x256xbf16>, vector<32x256xf32> -> vector<32x256xf32>
      %33 = arith.addf %27, %32 : vector<32x256xf32>
      %c0_19 = arith.constant 0 : index
      %34 = arith.index_cast %2 : i32 to index
      %35 = vector.load %arg11[%c0_19, %34] : memref<32x256xf32, #tpu.memory_space<vmem>>, vector<32x256xf32>
      tpu.vector_store %arg11[%c0_19, %34], %33 {strides = array<i32>} : memref<32x256xf32, #tpu.memory_space<vmem>>, vector<32x256xf32>,
    } else {
    }
    %c3_i32 = arith.constant 3 : i32
    %12 = arith.cmpi eq, %arg0, %c3_i32 : i32
    %13 = arith.extui %12 : i1 to i32
    %c0_i32_4 = arith.constant 0 : i32
    %14 = arith.cmpi ne, %13, %c0_i32_4 : i32
    scf.if %14 {
      %c0_5 = arith.constant 0 : index
      %c0_6 = arith.constant 0 : index
      %15 = vector.load %arg17[%c0_5, %c0_6] : memref<16x256xbf16, #tpu.memory_space<vmem>>, vector<16x256xbf16>
      %cst = arith.constant dense<0.000000e+00> : vector<16x256xf32>
      %16 = tpu.matmul %15, %0, %cst {dimension_numbers = #tpu.dot_dimension_numbers<[1], [0], [0], [1], [0, 0, 1, 1], [], []>} : vector<16x256xbf16>, vector<256x256xbf16>, vector<16x256xf32> -> vector<16x256xf32>
      %cst_7 = arith.constant 2.000000e+00 : f32
      %17 = vector.broadcast %cst_7 : f32 to vector<16x256xf32>
      %18 = arith.mulf %17, %16 : vector<16x256xf32>
      %c0_8 = arith.constant 0 : index
      %19 = arith.index_cast %2 : i32 to index
      %20 = vector.load %arg12[%c0_8, %19] : memref<16x256xf32, #tpu.memory_space<vmem>>, vector<16x256xf32>
      %21 = arith.subf %18, %20 : vector<16x256xf32>
      %22 = arith.truncf %21 : vector<16x256xf32> to vector<16x256xbf16>
      %c2 = arith.constant 2 : index
      %c0_9 = arith.constant 0 : index
      %c0_10 = arith.constant 0 : index
      %23 = vector.load %arg8[%c2, %c0_9, %c0_10] : memref<3x32x16xbf16, #tpu.memory_space<vmem>>, vector<1x32x16xbf16>
      %24 = vector.shape_cast %23 : vector<1x32x16xbf16> to vector<32x16xbf16>
      %cst_11 = arith.constant dense<0.000000e+00> : vector<32x256xf32>
      %25 = tpu.matmul %24, %22, %cst_11 {dimension_numbers = #tpu.dot_dimension_numbers<[1], [0], [0], [1], [0, 0, 1, 1], [], []>} : vector<32x16xbf16>, vector<16x256xbf16>, vector<32x256xf32> -> vector<32x256xf32>
      %c0_12 = arith.constant 0 : index
      %26 = arith.index_cast %2 : i32 to index
      %27 = vector.load %arg11[%c0_12, %26] : memref<32x256xf32, #tpu.memory_space<vmem>>, vector<32x256xf32>
      %28 = arith.addf %27, %25 : vector<32x256xf32>
      %c0_13 = arith.constant 0 : index
      %29 = arith.index_cast %2 : i32 to index
      %30 = vector.load %arg11[%c0_13, %29] : memref<32x256xf32, #tpu.memory_space<vmem>>, vector<32x256xf32>
      tpu.vector_store %arg11[%c0_13, %29], %28 {strides = array<i32>} : memref<32x256xf32, #tpu.memory_space<vmem>>, vector<32x256xf32>,
      %c0_i32_14 = arith.constant 0 : i32
      %31 = arith.cmpi eq, %arg1, %c0_i32_14 : i32
      %32 = arith.extui %31 : i1 to i32
      %c0_i32_15 = arith.constant 0 : i32
      %33 = arith.cmpi ne, %32, %c0_i32_15 : i32
      scf.if %33 {
        %c0_16 = arith.constant 0 : index
        %c0_17 = arith.constant 0 : index
        %34 = vector.load %arg11[%c0_16, %c0_17] : memref<32x256xf32, #tpu.memory_space<vmem>>, vector<32x256xf32>
        %cst_18 = arith.constant dense<0.000000e+00> : vector<32xf32>
        %35 = vector.multi_reduction <add>, %34, %cst_18 [1] : vector<32x256xf32> to vector<32xf32>
        %36 = vector.shape_cast %35 : vector<32xf32> to vector<32x1xf32>
        %37 = vector.extract_strided_slice %36 {offsets = [0, 0], sizes = [16, 1], strides = [1, 1]} : vector<32x1xf32> to vector<16x1xf32>
        %cst_19 = arith.constant 0.000000e+00 : f32
        %38 = vector.broadcast %cst_19 : f32 to vector<16x1xf32>
        %39 = arith.addf %38, %37 : vector<16x1xf32>
        %40 = vector.extract_strided_slice %36 {offsets = [16, 0], sizes = [16, 1], strides = [1, 1]} : vector<32x1xf32> to vector<16x1xf32>
        %41 = arith.addf %39, %40 : vector<16x1xf32>
        %cst_20 = arith.constant 5.120000e+02 : f32
        %42 = vector.broadcast %cst_20 : f32 to vector<16x1xf32>
        %43 = arith.divf %41, %42 : vector<16x1xf32>
        %44 = tpu.concatenate %43, %43 in 0 : vector<16x1xf32>, vector<16x1xf32> -> vector<32x1xf32>
        %45 = vector.broadcast %44 : vector<32x1xf32> to vector<32x256xf32>
        %46 = arith.subf %34, %45 : vector<32x256xf32>
        %47 = arith.mulf %46, %46 : vector<32x256xf32>
        %cst_21 = arith.constant dense<0.000000e+00> : vector<32xf32>
        %48 = vector.multi_reduction <add>, %47, %cst_21 [1] : vector<32x256xf32> to vector<32xf32>
        %49 = vector.shape_cast %48 : vector<32xf32> to vector<32x1xf32>
        %50 = vector.extract_strided_slice %49 {offsets = [0, 0], sizes = [16, 1], strides = [1, 1]} : vector<32x1xf32> to vector<16x1xf32>
        %cst_22 = arith.constant 0.000000e+00 : f32
        %51 = vector.broadcast %cst_22 : f32 to vector<16x1xf32>
        %52 = arith.addf %51, %50 : vector<16x1xf32>
        %53 = vector.extract_strided_slice %49 {offsets = [16, 0], sizes = [16, 1], strides = [1, 1]} : vector<32x1xf32> to vector<16x1xf32>
        %54 = arith.addf %52, %53 : vector<16x1xf32>
        %cst_23 = arith.constant 5.120000e+02 : f32
        %55 = vector.broadcast %cst_23 : f32 to vector<16x1xf32>
        %56 = arith.divf %54, %55 : vector<16x1xf32>
        %c0_24 = arith.constant 0 : index
        %c0_25 = arith.constant 0 : index
        %57 = vector.load %arg9[%c0_24, %c0_25] : memref<32x1xf32, #tpu.memory_space<vmem>>, vector<32x1xf32>
        %cst_26 = arith.constant 9.99999974E-6 : f32
        %58 = vector.broadcast %cst_26 : f32 to vector<16x1xf32>
        %59 = arith.addf %56, %58 : vector<16x1xf32>
        %60 = math.rsqrt %59 : vector<16x1xf32>
        %61 = tpu.concatenate %60, %60 in 0 : vector<16x1xf32>, vector<16x1xf32> -> vector<32x1xf32>
        %62 = arith.mulf %57, %61 : vector<32x1xf32>
        %63 = vector.broadcast %62 : vector<32x1xf32> to vector<32x256xf32>
        %64 = arith.mulf %46, %63 : vector<32x256xf32>
        %c0_27 = arith.constant 0 : index
        %c0_28 = arith.constant 0 : index
        %65 = vector.load %arg10[%c0_27, %c0_28] : memref<32x1xf32, #tpu.memory_space<vmem>>, vector<32x1xf32>
        %66 = vector.broadcast %65 : vector<32x1xf32> to vector<32x256xf32>
        %67 = arith.addf %64, %66 : vector<32x256xf32>
        %cst_29 = arith.constant 0.000000e+00 : f32
        %68 = vector.broadcast %cst_29 : f32 to vector<32x256xf32>
        %69 = arith.maximumf %67, %68 : vector<32x256xf32>
        %c0_30 = arith.constant 0 : index
        %c0_31 = arith.constant 0 : index
        %70 = vector.load %arg11[%c0_30, %c0_31] : memref<32x256xf32, #tpu.memory_space<vmem>>, vector<32x256xf32>
        tpu.vector_store %arg11[%c0_30, %c0_31], %69 {strides = array<i32>} : memref<32x256xf32, #tpu.memory_space<vmem>>, vector<32x256xf32>,
      } else {
      }
    } else {
    }
    return
  }
  func.func @transform_0(%arg0: i32, %arg1: i32) -> (i32, i32) {
    %c0_i32 = arith.constant 0 : i32
    %c0_i32_0 = arith.constant 0 : i32
    return %c0_i32, %arg1 : i32, i32
  }
  func.func @transform_1(%arg0: i32, %arg1: i32) -> (i32, i32) {
    %c0_i32 = arith.constant 0 : i32
    %c0_i32_0 = arith.constant 0 : i32
    %c0_i32_1 = arith.constant 0 : i32
    return %c0_i32, %c0_i32_0 : i32, i32
  }
  func.func @transform_2(%arg0: i32, %arg1: i32) -> (i32, i32) {
    %c0_i32 = arith.constant 0 : i32
    %c0_i32_0 = arith.constant 0 : i32
    %c0_i32_1 = arith.constant 0 : i32
    return %c0_i32, %c0_i32_0 : i32, i32
  }
  func.func @transform_3(%arg0: i32, %arg1: i32) -> (i32, i32, i32) {
    %c0_i32 = arith.constant 0 : i32
    %c0_i32_0 = arith.constant 0 : i32
    %c0_i32_1 = arith.constant 0 : i32
    %c0_i32_2 = arith.constant 0 : i32
    return %c0_i32, %c0_i32_0, %c0_i32_1 : i32, i32, i32
  }
  func.func @transform_4(%arg0: i32, %arg1: i32) -> (i32, i32) {
    %c0_i32 = arith.constant 0 : i32
    %c0_i32_0 = arith.constant 0 : i32
    %c0_i32_1 = arith.constant 0 : i32
    return %c0_i32, %c0_i32_0 : i32, i32
  }
  func.func @transform_5(%arg0: i32, %arg1: i32) -> (i32, i32) {
    %c0_i32 = arith.constant 0 : i32
    %c0_i32_0 = arith.constant 0 : i32
    %c0_i32_1 = arith.constant 0 : i32
    return %c0_i32, %c0_i32_0 : i32, i32
  }
  func.func @transform_6(%arg0: i32, %arg1: i32) -> (i32, i32, i32) {
    %c0_i32 = arith.constant 0 : i32
    %c0_i32_0 = arith.constant 0 : i32
    %c0_i32_1 = arith.constant 0 : i32
    %c0_i32_2 = arith.constant 0 : i32
    return %c0_i32, %c0_i32_0, %c0_i32_1 : i32, i32, i32
  }
  func.func @transform_7(%arg0: i32, %arg1: i32) -> (i32, i32) {
    %c0_i32 = arith.constant 0 : i32
    %c0_i32_0 = arith.constant 0 : i32
    %c0_i32_1 = arith.constant 0 : i32
    return %c0_i32, %c0_i32_0 : i32, i32
  }
  func.func @transform_8(%arg0: i32, %arg1: i32) -> (i32, i32) {
    %c0_i32 = arith.constant 0 : i32
    %c0_i32_0 = arith.constant 0 : i32
    %c0_i32_1 = arith.constant 0 : i32
    return %c0_i32, %c0_i32_0 : i32, i32
  }
  func.func @transform_9(%arg0: i32, %arg1: i32) -> (i32, i32) {
    %c0_i32 = arith.constant 0 : i32
    %c0_i32_0 = arith.constant 0 : i32
    %c0_i32_1 = arith.constant 0 : i32
    return %c0_i32, %c0_i32_0 : i32, i32
  }
}

</mosaic_0001>

<llo_original>
// kernel: tpu_custom_call.1
$region0: #{tpu_custom_call.1}
  #allocation0 [shape = 'u32[]', space=smem, size = 0x4, offset = 0x4, fixed_abs, tag = 'smem constant byte address 0x4 - core index']
  #allocation1 [shape = 'u32[72,128]{1,0:T(1,128)}', space=vmem, size = 0x9000, scoped, tag = 'internal scratch']
  #allocation2 [shape = 'f32[16,256]{1,0:T(8,128)}', space=vmem, size = 0x4000, scoped, tag = 'scratch operand']
  #allocation3 [shape = 'bf16[16,256]{1,0:T(8,128)(2,1)}', space=vmem, size = 0x2000, scoped, tag = 'scratch operand']
  #allocation4 [shape = 'f32[8,256]{1,0:T(8,128)}', space=vmem, size = 0x2000, scoped, tag = 'scratch operand']
  #allocation5 [shape = 'bf16[8,256]{1,0:T(8,128)(2,1)}', space=vmem, size = 0x1000, scoped, tag = 'scratch operand']
  #allocation6 [shape = 'f32[16,256]{1,0:T(8,128)}', space=vmem, size = 0x4000, scoped, tag = 'scratch operand']
  #allocation7 [shape = 'bf16[16,256]{1,0:T(8,128)(2,1)}', space=vmem, size = 0x2000, scoped, tag = 'scratch operand']
  %s0 = inlined_call_operand.hbm [shape: bf16[256,256], index: 0, kind: input, shape index: {}]
  %s1 = inlined_call_operand.vmem [shape: f32[8,256], index: 1, kind: input, shape index: {}]
  %s2 = inlined_call_operand.vmem [shape: bf16[8,256], index: 2, kind: input, shape index: {}]
  %s3 = inlined_call_operand.vmem [shape: bf16[3,16,8], index: 3, kind: input, shape index: {}]
  %s4 = inlined_call_operand.vmem [shape: f32[16,1], index: 4, kind: input, shape index: {}]
  %s5 = inlined_call_operand.vmem [shape: f32[16,1], index: 5, kind: input, shape index: {}]
  %s6 = inlined_call_operand.vmem [shape: bf16[3,32,16], index: 6, kind: input, shape index: {}]
  %s7 = inlined_call_operand.vmem [shape: f32[32,1], index: 7, kind: input, shape index: {}]
  %s8 = inlined_call_operand.vmem [shape: f32[32,1], index: 8, kind: input, shape index: {}]
  %s9 = inlined_call_operand.hbm [shape: f32[32,256], index: 9, kind: output, shape index: {}]
  %s10 = sld [smem:[#allocation0]]
  $region97: #{tpu_custom_call.1} parent=0
    _
  %s12 = ssub.s32 1, %s10
  %s13 = scalar_select 0, %s12, %s10
  $region1: #{tpu_custom_call.1} parent=0
    #allocation8 [shape = 'u8[131072]{0}', space=vmem, size = 0x20000, scoped, tag = 'input window, operand 0, single buffered']
    #allocation9 [shape = 's32[2]{0}', space=sflag, size = 0x8, scoped, tag = 'scoped memory for tpu_custom_call.1']
    #allocation10 [shape = 's32[2]{0}', space=sflag, size = 0x8, scoped, tag = 'scoped memory for tpu_custom_call.1']
    #allocation11 [shape = 'u8[32768]{0}', space=vmem, size = 0x8000, scoped, tag = 'output window, operand 0, single buffered']
    %14 = vsyncpa [#allocation9], 0
    %15 = vsyncpa [#allocation10], 0
    loop: start=0, step=1, limit=6
    $region2: #{tpu_custom_call.1} parent=1 // loop_pre_header
      _
    $region3: #{tpu_custom_call.1} parent=1 // loop_header
      %s17 = sphi 0, %s21
      %p18 = scmp.ge.s32.totalorder %s17, 6
      %s24 = sphi 0, %s36
      %s25 = sphi 0, %s32
      %s26 = sphi 0, %s24
      %s27 = sphi 0, %s25
      %s28 = sphi 0, %s26
      %s29 = sphi 0, %s27
      %s39 = sphi 0, %s41
      %s42 = sphi 0, %s39
      %s43 = sphi 0, %s42
      %s59 = sphi 0, %s43
      %s63 = sphi 0, %s63
      %s65 = sphi 0, %s63
      %s66 = sphi 0, %s65
      %s80 = sphi 0, %s66
      %s84 = sphi 0, %s84
      %s86 = sphi 0, %s84
      %s87 = sphi 0, %s86
      %s101 = sphi 0, %s87
      %s105 = sphi 0, %s105
      %s107 = sphi 0, %s105
      %s108 = sphi 0, %s107
      %s122 = sphi 0, %s108
      %s126 = sphi 0, %s126
      %s128 = sphi 0, %s126
      %s129 = sphi 0, %s128
      %s143 = sphi 0, %s129
      %s147 = sphi 0, %s147
      %s149 = sphi 0, %s147
      %s150 = sphi 0, %s149
      %s164 = sphi 0, %s150
      %s168 = sphi 0, %s168
      %s170 = sphi 0, %s168
      %s171 = sphi 0, %s170
      %s185 = sphi 0, %s171
      %s189 = sphi 0, %s189
      %s191 = sphi 0, %s189
      %s192 = sphi 0, %s191
      %s206 = sphi 0, %s192
      %s210 = sphi 0, %s210
      %s212 = sphi 0, %s210
      %s213 = sphi 0, %s212
      %s227 = sphi 0, %s213
      %s231 = sphi 0, %s231
      %s233 = sphi 0, %s231
      %s234 = sphi 0, %s233
      %s248 = sphi 0, %s234
    $region4: #{tpu_custom_call.1} parent=1 // loop_header_branch
      %20 = sbr.rel (%p18) target = $region8
    $region5: #{tpu_custom_call.1} parent=1 // loop_body
      %s22 = ssub.s32 %s17, 1
      %s23 = ssub.s32 %s17, 2
      %s30 = sadd.s32 1, %s25
      %p31 = scmp.ge.s32.totalorder %s30, 1
      %s32 = scalar_select %p31, 0, %s30
      %s33 = sadd.s32 1, %s24
      %s34 = scalar_select %p31, %s33, %s24
      %p35 = scmp.ge.s32.totalorder %s34, 4
      %s36 = scalar_select %p35, 0, %s34
      %s37 = ssub.s32 %s25, %s32
      %p38 = scmp.eq.s32.totalorder %s37, 0
      %s40 = sadd.s32 %s39, 1
      %s41 = scalar_select %p38, %s39, %s40
      %p44 = pneg %p38
      %p45 = scmp.eq.s32.totalorder %s17, 3
      %p46 = por %p44, %p45
      %p47 = scmp.ne.s32.totalorder %s39, %s42
      %p48 = scmp.eq.s32.totalorder %s17, 0
      %p49 = por %p47, %p48
      %p50 = scmp.ne.s32.totalorder %s39, %s42
      %p51 = scmp.eq.s32.totalorder %s22, 3
      %p52 = por %p50, %p51
      %p53 = scmp.ne.s32.totalorder %s42, %s43
      %p54 = scmp.eq.s32.totalorder %s22, 0
      %p55 = por %p53, %p54
      %p56 = scmp.ne.s32.totalorder %s42, %s43
      %p57 = scmp.eq.s32.totalorder %s23, 3
      %p58 = por %p56, %p57
      %p60 = scmp.ne.s32.totalorder %s43, %s59
      %p61 = scmp.eq.s32.totalorder %s23, 0
      %p62 = por %p60, %p61
      %s64 = sadd.s32 %s63, 1
      %p67 = scmp.eq.s32.totalorder %s17, 3
      %p68 = scmp.ne.s32.totalorder %s63, %s65
      %p69 = scmp.eq.s32.totalorder %s17, 0
      %p70 = por %p68, %p69
      %p71 = scmp.ne.s32.totalorder %s63, %s65
      %p72 = scmp.eq.s32.totalorder %s22, 3
      %p73 = por %p71, %p72
      %p74 = scmp.ne.s32.totalorder %s65, %s66
      %p75 = scmp.eq.s32.totalorder %s22, 0
      %p76 = por %p74, %p75
      %p77 = scmp.ne.s32.totalorder %s65, %s66
      %p78 = scmp.eq.s32.totalorder %s23, 3
      %p79 = por %p77, %p78
      %p81 = scmp.ne.s32.totalorder %s66, %s80
      %p82 = scmp.eq.s32.totalorder %s23, 0
      %p83 = por %p81, %p82
      %s85 = sadd.s32 %s84, 1
      %p88 = scmp.eq.s32.totalorder %s17, 3
      %p89 = scmp.ne.s32.totalorder %s84, %s86
      %p90 = scmp.eq.s32.totalorder %s17, 0
      %p91 = por %p89, %p90
      %p92 = scmp.ne.s32.totalorder %s84, %s86
      %p93 = scmp.eq.s32.totalorder %s22, 3
      %p94 = por %p92, %p93
      %p95 = scmp.ne.s32.totalorder %s86, %s87
      %p96 = scmp.eq.s32.totalorder %s22, 0
      %p97 = por %p95, %p96
      %p98 = scmp.ne.s32.totalorder %s86, %s87
      %p99 = scmp.eq.s32.totalorder %s23, 3
      %p100 = por %p98, %p99
      %p102 = scmp.ne.s32.totalorder %s87, %s101
      %p103 = scmp.eq.s32.totalorder %s23, 0
      %p104 = por %p102, %p103
      %s106 = sadd.s32 %s105, 1
      %p109 = scmp.eq.s32.totalorder %s17, 3
      %p110 = scmp.ne.s32.totalorder %s105, %s107
      %p111 = scmp.eq.s32.totalorder %s17, 0
      %p112 = por %p110, %p111
      %p113 = scmp.ne.s32.totalorder %s105, %s107
      %p114 = scmp.eq.s32.totalorder %s22, 3
      %p115 = por %p113, %p114
      %p116 = scmp.ne.s32.totalorder %s107, %s108
      %p117 = scmp.eq.s32.totalorder %s22, 0
      %p118 = por %p116, %p117
      %p119 = scmp.ne.s32.totalorder %s107, %s108
      %p120 = scmp.eq.s32.totalorder %s23, 3
      %p121 = por %p119, %p120
      %p123 = scmp.ne.s32.totalorder %s108, %s122
      %p124 = scmp.eq.s32.totalorder %s23, 0
      %p125 = por %p123, %p124
      %s127 = sadd.s32 %s126, 1
      %p130 = scmp.eq.s32.totalorder %s17, 3
      %p131 = scmp.ne.s32.totalorder %s126, %s128
      %p132 = scmp.eq.s32.totalorder %s17, 0
      %p133 = por %p131, %p132
      %p134 = scmp.ne.s32.totalorder %s126, %s128
      %p135 = scmp.eq.s32.totalorder %s22, 3
      %p136 = por %p134, %p135
      %p137 = scmp.ne.s32.totalorder %s128, %s129
      %p138 = scmp.eq.s32.totalorder %s22, 0
      %p139 = por %p137, %p138
      %p140 = scmp.ne.s32.totalorder %s128, %s129
      %p141 = scmp.eq.s32.totalorder %s23, 3
      %p142 = por %p140, %p141
      %p144 = scmp.ne.s32.totalorder %s129, %s143
      %p145 = scmp.eq.s32.totalorder %s23, 0
      %p146 = por %p144, %p145
      %s148 = sadd.s32 %s147, 1
      %p151 = scmp.eq.s32.totalorder %s17, 3
      %p152 = scmp.ne.s32.totalorder %s147, %s149
      %p153 = scmp.eq.s32.totalorder %s17, 0
      %p154 = por %p152, %p153
      %p155 = scmp.ne.s32.totalorder %s147, %s149
      %p156 = scmp.eq.s32.totalorder %s22, 3
      %p157 = por %p155, %p156
      %p158 = scmp.ne.s32.totalorder %s149, %s150
      %p159 = scmp.eq.s32.totalorder %s22, 0
      %p160 = por %p158, %p159
      %p161 = scmp.ne.s32.totalorder %s149, %s150
      %p162 = scmp.eq.s32.totalorder %s23, 3
      %p163 = por %p161, %p162
      %p165 = scmp.ne.s32.totalorder %s150, %s164
      %p166 = scmp.eq.s32.totalorder %s23, 0
      %p167 = por %p165, %p166
      %s169 = sadd.s32 %s168, 1
      %p172 = scmp.eq.s32.totalorder %s17, 3
      %p173 = scmp.ne.s32.totalorder %s168, %s170
      %p174 = scmp.eq.s32.totalorder %s17, 0
      %p175 = por %p173, %p174
      %p176 = scmp.ne.s32.totalorder %s168, %s170
      %p177 = scmp.eq.s32.totalorder %s22, 3
      %p178 = por %p176, %p177
      %p179 = scmp.ne.s32.totalorder %s170, %s171
      %p180 = scmp.eq.s32.totalorder %s22, 0
      %p181 = por %p179, %p180
      %p182 = scmp.ne.s32.totalorder %s170, %s171
      %p183 = scmp.eq.s32.totalorder %s23, 3
      %p184 = por %p182, %p183
      %p186 = scmp.ne.s32.totalorder %s171, %s185
      %p187 = scmp.eq.s32.totalorder %s23, 0
      %p188 = por %p186, %p187
      %s190 = sadd.s32 %s189, 1
      %p193 = scmp.eq.s32.totalorder %s17, 3
      %p194 = scmp.ne.s32.totalorder %s189, %s191
      %p195 = scmp.eq.s32.totalorder %s17, 0
      %p196 = por %p194, %p195
      %p197 = scmp.ne.s32.totalorder %s189, %s191
      %p198 = scmp.eq.s32.totalorder %s22, 3
      %p199 = por %p197, %p198
      %p200 = scmp.ne.s32.totalorder %s191, %s192
      %p201 = scmp.eq.s32.totalorder %s22, 0
      %p202 = por %p200, %p201
      %p203 = scmp.ne.s32.totalorder %s191, %s192
      %p204 = scmp.eq.s32.totalorder %s23, 3
      %p205 = por %p203, %p204
      %p207 = scmp.ne.s32.totalorder %s192, %s206
      %p208 = scmp.eq.s32.totalorder %s23, 0
      %p209 = por %p207, %p208
      %s211 = sadd.s32 %s210, 1
      %p214 = scmp.eq.s32.totalorder %s17, 3
      %p215 = scmp.ne.s32.totalorder %s210, %s212
      %p216 = scmp.eq.s32.totalorder %s17, 0
      %p217 = por %p215, %p216
      %p218 = scmp.ne.s32.totalorder %s210, %s212
      %p219 = scmp.eq.s32.totalorder %s22, 3
      %p220 = por %p218, %p219
      %p221 = scmp.ne.s32.totalorder %s212, %s213
      %p222 = scmp.eq.s32.totalorder %s22, 0
      %p223 = por %p221, %p222
      %p224 = scmp.ne.s32.totalorder %s212, %s213
      %p225 = scmp.eq.s32.totalorder %s23, 3
      %p226 = por %p224, %p225
      %p228 = scmp.ne.s32.totalorder %s213, %s227
      %p229 = scmp.eq.s32.totalorder %s23, 0
      %p230 = por %p228, %p229
      %s232 = sadd.s32 %s231, 1
      %p235 = scmp.eq.s32.totalorder %s17, 3
      %p236 = scmp.ne.s32.totalorder %s231, %s233
      %p237 = scmp.eq.s32.totalorder %s17, 0
      %p238 = por %p236, %p237
      %p239 = scmp.ne.s32.totalorder %s231, %s233
      %p240 = scmp.eq.s32.totalorder %s22, 3
      %p241 = por %p239, %p240
      %p242 = scmp.ne.s32.totalorder %s233, %s234
      %p243 = scmp.eq.s32.totalorder %s22, 0
      %p244 = por %p242, %p243
      %p245 = scmp.ne.s32.totalorder %s233, %s234
      %p246 = scmp.eq.s32.totalorder %s23, 3
      %p247 = por %p245, %p246
      %p249 = scmp.ne.s32.totalorder %s234, %s248
      %p250 = scmp.eq.s32.totalorder %s23, 0
      %p251 = por %p249, %p250
      %p252 = scmp.le.s32.totalorder 1, %s17
      %p253 = scmp.lt.s32.totalorder %s17, 5
      %p254 = pnand %p252, %p253
      %p255 = pneg %p254
      // Predicated region
      $region9: #{tpu_custom_call.1} parent=5 // pred_check
        _
      $region10: #{tpu_custom_call.1} parent=5 // pred_check_branch
        %257 = sbr.rel (%p254) target = $region12
      $region11: #{tpu_custom_call.1} parent=5 // pred_region
        %s258 = ssub.s32 %s17, 1
        // Predicated region
        $region13: #{tpu_custom_call.1} parent=11 // pred_check
          %p259 = pneg %p55
        $region14: #{tpu_custom_call.1} parent=11 // pred_check_branch
          %261 = sbr.rel (%p259) target = $region16
        $region15: #{tpu_custom_call.1} parent=11 // pred_region
          %s262 = smul.u32 2, %s27
          %264 = vsyncadd [#allocation9], 0
          %s265 = smul.addr %s262, 4
          %s266 = scalar_lea.hbm %s0, %s265
          %s267 = sshll.u32 %s266, 4
          %s268 = int_to_ptr.hbm [resolvable:$true] %s267
          %s269 = sshll.u32 [#allocation8], 4
          %s270 = int_to_ptr.vmem [resolvable:$true] %s269
          %275 = dma.hbm_to_vmem [thread:$0]  %s268, 4096, %s270, [#allocation9], 128, 128, 8
        $region16: #{tpu_custom_call.1} parent=11 // pred_fallthru
          _
        // Predicated region
        $region17: #{tpu_custom_call.1} parent=11 // pred_check
          %p276 = pneg %p76
        $region18: #{tpu_custom_call.1} parent=11 // pred_check_branch
          %278 = sbr.rel (%p276) target = $region20
        $region19: #{tpu_custom_call.1} parent=11 // pred_region
          _
        $region20: #{tpu_custom_call.1} parent=11 // pred_fallthru
          _
        // Predicated region
        $region21: #{tpu_custom_call.1} parent=11 // pred_check
          %p279 = pneg %p97
        $region22: #{tpu_custom_call.1} parent=11 // pred_check_branch
          %281 = sbr.rel (%p279) target = $region24
        $region23: #{tpu_custom_call.1} parent=11 // pred_region
          _
        $region24: #{tpu_custom_call.1} parent=11 // pred_fallthru
          _
        // Predicated region
        $region25: #{tpu_custom_call.1} parent=11 // pred_check
          %p282 = pneg %p118
        $region26: #{tpu_custom_call.1} parent=11 // pred_check_branch
          %284 = sbr.rel (%p282) target = $region28
        $region27: #{tpu_custom_call.1} parent=11 // pred_region
          _
        $region28: #{tpu_custom_call.1} parent=11 // pred_fallthru
          _
        // Predicated region
        $region29: #{tpu_custom_call.1} parent=11 // pred_check
          %p285 = pneg %p139
        $region30: #{tpu_custom_call.1} parent=11 // pred_check_branch
          %287 = sbr.rel (%p285) target = $region32
        $region31: #{tpu_custom_call.1} parent=11 // pred_region
          _
        $region32: #{tpu_custom_call.1} parent=11 // pred_fallthru
          _
        // Predicated region
        $region33: #{tpu_custom_call.1} parent=11 // pred_check
          %p288 = pneg %p160
        $region34: #{tpu_custom_call.1} parent=11 // pred_check_branch
          %290 = sbr.rel (%p288) target = $region36
        $region35: #{tpu_custom_call.1} parent=11 // pred_region
          _
        $region36: #{tpu_custom_call.1} parent=11 // pred_fallthru
          _
        // Predicated region
        $region37: #{tpu_custom_call.1} parent=11 // pred_check
          %p291 = pneg %p181
        $region38: #{tpu_custom_call.1} parent=11 // pred_check_branch
          %293 = sbr.rel (%p291) target = $region40
        $region39: #{tpu_custom_call.1} parent=11 // pred_region
          _
        $region40: #{tpu_custom_call.1} parent=11 // pred_fallthru
          _
        // Predicated region
        $region41: #{tpu_custom_call.1} parent=11 // pred_check
          %p294 = pneg %p202
        $region42: #{tpu_custom_call.1} parent=11 // pred_check_branch
          %296 = sbr.rel (%p294) target = $region44
        $region43: #{tpu_custom_call.1} parent=11 // pred_region
          _
        $region44: #{tpu_custom_call.1} parent=11 // pred_fallthru
          _
        // Predicated region
        $region45: #{tpu_custom_call.1} parent=11 // pred_check
          %p297 = pneg %p223
        $region46: #{tpu_custom_call.1} parent=11 // pred_check_branch
          %299 = sbr.rel (%p297) target = $region48
        $region47: #{tpu_custom_call.1} parent=11 // pred_region
          _
        $region48: #{tpu_custom_call.1} parent=11 // pred_fallthru
          _
      $region12: #{tpu_custom_call.1} parent=5 // pred_fallthru
        _
      %p300 = scmp.lt.s32.totalorder %s17, 4
      // Predicated region
      $region49: #{tpu_custom_call.1} parent=5 // pred_check
        %p301 = pneg %p300
      $region50: #{tpu_custom_call.1} parent=5 // pred_check_branch
        %303 = sbr.rel (%p301) target = $region52
      $region51: #{tpu_custom_call.1} parent=5 // pred_region
        _
      $region52: #{tpu_custom_call.1} parent=5 // pred_fallthru
        _
      %p304 = scmp.le.s32.totalorder 1, %s17
      %p305 = scmp.lt.s32.totalorder %s17, 5
      %p306 = pnand %p304, %p305
      %p307 = pneg %p306
      // Predicated region
      $region53: #{tpu_custom_call.1} parent=5 // pred_check
        _
      $region54: #{tpu_custom_call.1} parent=5 // pred_check_branch
        %309 = sbr.rel (%p306) target = $region56
      $region55: #{tpu_custom_call.1} parent=5 // pred_region
        %s310 = ssub.s32 %s17, 1
        // Predicated region
        $region57: #{tpu_custom_call.1} parent=55 // pred_check
          %p311 = pneg %p55
        $region58: #{tpu_custom_call.1} parent=55 // pred_check_branch
          %313 = sbr.rel (%p311) target = $region60
        $region59: #{tpu_custom_call.1} parent=55 // pred_region
          %315 = dma.done [#allocation9], 4096
        $region60: #{tpu_custom_call.1} parent=55 // pred_fallthru
          _
        %p316 = pneg %p55
        %p317 = pneg %p52
        %p318 = pneg %p76
        %p319 = pneg %p73
        %p320 = pneg %p97
        %p321 = pneg %p94
        %p322 = pneg %p118
        %p323 = pneg %p115
        %p324 = pneg %p139
        %p325 = pneg %p136
        %p326 = pneg %p160
        %p327 = pneg %p157
        %p328 = pneg %p181
        %p329 = pneg %p178
        %p330 = pneg %p202
        %p331 = pneg %p199
        %p332 = pneg %p223
        %p333 = pneg %p220
        %p334 = pneg %p244
        %p335 = pneg %p241
        %s336 = smul.u32 2, %s27
        %v338 = vld [vmem:[#allocation8] sm:$0xff]
        %v339 = vld [vmem:[#allocation8 + $0x8] sm:$0xff]
        %v340 = vld [vmem:[#allocation8 + $0x10] sm:$0xff]
        %v341 = vld [vmem:[#allocation8 + $0x18] sm:$0xff]
        %v342 = vld [vmem:[#allocation8 + $0x20] sm:$0xff]
        %v343 = vld [vmem:[#allocation8 + $0x28] sm:$0xff]
        %v344 = vld [vmem:[#allocation8 + $0x30] sm:$0xff]
        %v345 = vld [vmem:[#allocation8 + $0x38] sm:$0xff]
        %v346 = vld [vmem:[#allocation8 + $0x40] sm:$0xff]
        %v347 = vld [vmem:[#allocation8 + $0x48] sm:$0xff]
        %v348 = vld [vmem:[#allocation8 + $0x50] sm:$0xff]
        %v349 = vld [vmem:[#allocation8 + $0x58] sm:$0xff]
        %v350 = vld [vmem:[#allocation8 + $0x60] sm:$0xff]
        %v351 = vld [vmem:[#allocation8 + $0x68] sm:$0xff]
        %v352 = vld [vmem:[#allocation8 + $0x70] sm:$0xff]
        %v353 = vld [vmem:[#allocation8 + $0x78] sm:$0xff]
        %v354 = vld [vmem:[#allocation8 + $0x80] sm:$0xff]
        %v355 = vld [vmem:[#allocation8 + $0x88] sm:$0xff]
        %v356 = vld [vmem:[#allocation8 + $0x90] sm:$0xff]
        %v357 = vld [vmem:[#allocation8 + $0x98] sm:$0xff]
        %v358 = vld [vmem:[#allocation8 + $0xa0] sm:$0xff]
        %v359 = vld [vmem:[#allocation8 + $0xa8] sm:$0xff]
        %v360 = vld [vmem:[#allocation8 + $0xb0] sm:$0xff]
        %v361 = vld [vmem:[#allocation8 + $0xb8] sm:$0xff]
        %v362 = vld [vmem:[#allocation8 + $0xc0] sm:$0xff]
        %v363 = vld [vmem:[#allocation8 + $0xc8] sm:$0xff]
        %v364 = vld [vmem:[#allocation8 + $0xd0] sm:$0xff]
        %v365 = vld [vmem:[#allocation8 + $0xd8] sm:$0xff]
        %v366 = vld [vmem:[#allocation8 + $0xe0] sm:$0xff]
        %v367 = vld [vmem:[#allocation8 + $0xe8] sm:$0xff]
        %v368 = vld [vmem:[#allocation8 + $0xf0] sm:$0xff]
        %v369 = vld [vmem:[#allocation8 + $0xf8] sm:$0xff]
        %s370 = smul.u32 %s27, 256
        %p371 = scmp.eq.s32.totalorder %s26, 0
        // Predicated region
        $region61: #{tpu_custom_call.1} parent=55 // pred_check
          %p372 = pneg %p371
        $region62: #{tpu_custom_call.1} parent=55 // pred_check_branch
          %374 = sbr.rel (%p372) target = $region64
        $region63: #{tpu_custom_call.1} parent=55 // pred_region
          %v375 = vld [vmem:[%s2] sm:$0xff]
          %v377 = vunpack.c.l.b16 %v375
          %v378 = vunpack.c.h.b16 %v375
          %v379 = vpack.c.b16 %v377, %v377
          %v380 = vpack.c.b16 %v378, %v378
          %v415 = vunpack.c.l.b16 %v338
          %v416 = vunpack.c.h.b16 %v338
          %v417 = vunpack.c.l.b16 %v339
          %v418 = vunpack.c.h.b16 %v339
          %v419 = vunpack.c.l.b16 %v340
          %v420 = vunpack.c.h.b16 %v340
          %v421 = vunpack.c.l.b16 %v341
          %v422 = vunpack.c.h.b16 %v341
          %v423 = vunpack.c.l.b16 %v342
          %v424 = vunpack.c.h.b16 %v342
          %v425 = vunpack.c.l.b16 %v343
          %v426 = vunpack.c.h.b16 %v343
          %v427 = vunpack.c.l.b16 %v344
          %v428 = vunpack.c.h.b16 %v344
          %v429 = vunpack.c.l.b16 %v345
          %v430 = vunpack.c.h.b16 %v345
          %v431 = vunpack.c.l.b16 %v346
          %v432 = vunpack.c.h.b16 %v346
          %v433 = vunpack.c.l.b16 %v347
          %v434 = vunpack.c.h.b16 %v347
          %v435 = vunpack.c.l.b16 %v348
          %v436 = vunpack.c.h.b16 %v348
          %v437 = vunpack.c.l.b16 %v349
          %v438 = vunpack.c.h.b16 %v349
          %v439 = vunpack.c.l.b16 %v350
          %v440 = vunpack.c.h.b16 %v350
          %v441 = vunpack.c.l.b16 %v351
          %v442 = vunpack.c.h.b16 %v351
          %v443 = vunpack.c.l.b16 %v352
          %v444 = vunpack.c.h.b16 %v352
          %v445 = vunpack.c.l.b16 %v353
          %v446 = vunpack.c.h.b16 %v353
          %v447 = vunpack.c.l.b16 %v354
          %v448 = vunpack.c.h.b16 %v354
          %v449 = vunpack.c.l.b16 %v355
          %v450 = vunpack.c.h.b16 %v355
          %v451 = vunpack.c.l.b16 %v356
          %v452 = vunpack.c.h.b16 %v356
          %v453 = vunpack.c.l.b16 %v357
          %v454 = vunpack.c.h.b16 %v357
          %v455 = vunpack.c.l.b16 %v358
          %v456 = vunpack.c.h.b16 %v358
          %v457 = vunpack.c.l.b16 %v359
          %v458 = vunpack.c.h.b16 %v359
          %v459 = vunpack.c.l.b16 %v360
          %v460 = vunpack.c.h.b16 %v360
          %v461 = vunpack.c.l.b16 %v361
          %v462 = vunpack.c.h.b16 %v361
          %v463 = vunpack.c.l.b16 %v362
          %v464 = vunpack.c.h.b16 %v362
          %v465 = vunpack.c.l.b16 %v363
          %v466 = vunpack.c.h.b16 %v363
          %v467 = vunpack.c.l.b16 %v364
          %v468 = vunpack.c.h.b16 %v364
          %v469 = vunpack.c.l.b16 %v365
          %v470 = vunpack.c.h.b16 %v365
          %v471 = vunpack.c.l.b16 %v366
          %v472 = vunpack.c.h.b16 %v366
          %v473 = vunpack.c.l.b16 %v367
          %v474 = vunpack.c.h.b16 %v367
          %v475 = vunpack.c.l.b16 %v368
          %v476 = vunpack.c.h.b16 %v368
          %v477 = vunpack.c.l.b16 %v369
          %v478 = vunpack.c.h.b16 %v369
          %v479 = vpack.c.b16 %v417, %v415
          %v480 = vpack.c.b16 %v418, %v416
          %v481 = vpack.c.b16 %v421, %v419
          %v482 = vpack.c.b16 %v422, %v420
          %v483 = vpack.c.b16 %v425, %v423
          %v484 = vpack.c.b16 %v426, %v424
          %v485 = vpack.c.b16 %v429, %v427
          %v486 = vpack.c.b16 %v430, %v428
          %v487 = vpack.c.b16 %v433, %v431
          %v488 = vpack.c.b16 %v434, %v432
          %v489 = vpack.c.b16 %v437, %v435
          %v490 = vpack.c.b16 %v438, %v436
          %v491 = vpack.c.b16 %v441, %v439
          %v492 = vpack.c.b16 %v442, %v440
          %v493 = vpack.c.b16 %v445, %v443
          %v494 = vpack.c.b16 %v446, %v444
          %v495 = vpack.c.b16 %v449, %v447
          %v496 = vpack.c.b16 %v450, %v448
          %v497 = vpack.c.b16 %v453, %v451
          %v498 = vpack.c.b16 %v454, %v452
          %v499 = vpack.c.b16 %v457, %v455
          %v500 = vpack.c.b16 %v458, %v456
          %v501 = vpack.c.b16 %v461, %v459
          %v502 = vpack.c.b16 %v462, %v460
          %v503 = vpack.c.b16 %v465, %v463
          %v504 = vpack.c.b16 %v466, %v464
          %v505 = vpack.c.b16 %v469, %v467
          %v506 = vpack.c.b16 %v470, %v468
          %v507 = vpack.c.b16 %v473, %v471
          %v508 = vpack.c.b16 %v474, %v472
          %v509 = vpack.c.b16 %v477, %v475
          %v510 = vpack.c.b16 %v478, %v476
          %543 = vmatpush.bf16.msra.mxu0 %v493
          %544 = vmatpush.bf16.msra.mxu0 %v491
          %545 = vmatpush.bf16.msra.mxu0 %v489
          %546 = vmatpush.bf16.msra.mxu0 %v487
          %547 = vmatpush.bf16.msra.mxu0 %v485
          %548 = vmatpush.bf16.msra.mxu0 %v483
          %549 = vmatpush.bf16.msra.mxu0 %v481
          %550 = vmatpush.bf16.msra.mxu0 %v479
          %551 = vmatmul.bf16.gmra.mxu0 %v379
          %v552 = vpop.f32.mrf.mxu0
          %v553 = vadd.f32 0.0, %v552
          %v554 = vpop.f32.mrf.mxu0
          %555 = vdwg.mxu0
          %556 = vmatpush.bf16.msra.mxu0 %v509
          %557 = vmatpush.bf16.msra.mxu0 %v507
          %558 = vmatpush.bf16.msra.mxu0 %v505
          %559 = vmatpush.bf16.msra.mxu0 %v503
          %560 = vmatpush.bf16.msra.mxu0 %v501
          %561 = vmatpush.bf16.msra.mxu0 %v499
          %562 = vmatpush.bf16.msra.mxu0 %v497
          %563 = vmatpush.bf16.msra.mxu0 %v495
          %564 = vmatmul.bf16.gmra.mxu0 %v380
          %v565 = vpop.f32.mrf.mxu0
          %v566 = vadd.f32 %v553, %v565
          %v567 = vpop.f32.mrf.mxu0
          %568 = vdwg.mxu0
          %569 = vmatpush.bf16.msra.mxu0 %v494
          %570 = vmatpush.bf16.msra.mxu0 %v492
          %571 = vmatpush.bf16.msra.mxu0 %v490
          %572 = vmatpush.bf16.msra.mxu0 %v488
          %573 = vmatpush.bf16.msra.mxu0 %v486
          %574 = vmatpush.bf16.msra.mxu0 %v484
          %575 = vmatpush.bf16.msra.mxu0 %v482
          %576 = vmatpush.bf16.msra.mxu0 %v480
          %577 = vmatmul.bf16.gmra.mxu0 %v379
          %v578 = vpop.f32.mrf.mxu0
          %v579 = vadd.f32 0.0, %v578
          %v580 = vpop.f32.mrf.mxu0
          %581 = vdwg.mxu0
          %582 = vmatpush.bf16.msra.mxu0 %v510
          %583 = vmatpush.bf16.msra.mxu0 %v508
          %584 = vmatpush.bf16.msra.mxu0 %v506
          %585 = vmatpush.bf16.msra.mxu0 %v504
          %586 = vmatpush.bf16.msra.mxu0 %v502
          %587 = vmatpush.bf16.msra.mxu0 %v500
          %588 = vmatpush.bf16.msra.mxu0 %v498
          %589 = vmatpush.bf16.msra.mxu0 %v496
          %590 = vmatmul.bf16.gmra.mxu0 %v380
          %v591 = vpop.f32.mrf.mxu0
          %v592 = vadd.f32 %v579, %v591
          %v593 = vpop.f32.mrf.mxu0
          %594 = vdwg.mxu0
          %v595 = vpack.c.bf16 %v592, %v566
          %s596 = sshra.s32 %s370, 7
          %s597 = sand.u32 %s370, 127
          %s598 = smul.addr %s596, 8
          %s599 = scalar_lea.vmem [#allocation4], %s598
          %600 = vst [vmem:[%s599] sm:$0xff] %v566
          %601 = vst [vmem:[%s599 + $0x8] sm:$0xff] %v592
          %s602 = smul.addr %s596, 4
          %s603 = scalar_lea.vmem [#allocation5], %s602
          %604 = vst [vmem:[%s603] sm:$0xff] %v595
          %s605 = scalar_lea.vmem %s3, 8
          %v606 = vld [vmem:[%s605] sm:$0xf]
          %v607 = vld [vmem:[%s605 + $0x4] sm:$0xf]
          %v608 = vld [vmem:[%s3] sm:$0xf]
          %v609 = vld [vmem:[%s3 + $0x4] sm:$0xf]
          %s610 = smul.addr %s596, 4
          %s611 = scalar_lea.vmem %s2, %s610
          %v612 = vld [vmem:[%s611] sm:$0xff]
          %v615 = vunpack.c.l.b16 %v608
          %v616 = vunpack.c.l.b16 %v609
          %v617 = vpack.c.b16 %v616, %v615
          %v619 = vunpack.c.l.b16 %v612
          %v620 = vunpack.c.h.b16 %v612
          %v621 = vpack.c.b16 %v619, %v619
          %v622 = vpack.c.b16 %v620, %v620
          %vm623 = vcmask 64512
          %v625 = vsel %vm623, %v617, 0
          %vm627 = vcmask 1043456
          %v629 = vsel %vm627, %v621, 0
          %v632 = vsel %vm627, %v622, 0
          %634 = vmatpush.bf16.msra.mxu0 0
          %635 = vmatpush.bf16.msra.mxu0 0
          %636 = vmatpush.bf16.msra.mxu0 0
          %637 = vmatpush.bf16.msra.mxu0 0
          %638 = vmatpush.bf16.msra.mxu0 0
          %639 = vmatpush.bf16.msra.mxu0 0
          %640 = vmatpush.bf16.msra.mxu0 0
          %641 = vmatpush.bf16.msra.mxu0 %v629
          %642 = vmatmul.bf16.gmra.mxu0 %v625
          %v643 = vpop.f32.mrf.mxu0
          %v644 = vadd.f32 0.0, %v643
          %v645 = vpop.f32.mrf.mxu0
          %v646 = vadd.f32 0.0, %v645
          %647 = vdwg.mxu0
          %648 = vmatpush.bf16.msra.mxu0 0
          %649 = vmatpush.bf16.msra.mxu0 0
          %650 = vmatpush.bf16.msra.mxu0 0
          %651 = vmatpush.bf16.msra.mxu0 0
          %652 = vmatpush.bf16.msra.mxu0 0
          %653 = vmatpush.bf16.msra.mxu0 0
          %654 = vmatpush.bf16.msra.mxu0 0
          %655 = vmatpush.bf16.msra.mxu0 %v632
          %656 = vmatmul.bf16.gmra.mxu0 %v625
          %v657 = vpop.f32.mrf.mxu0
          %v658 = vadd.f32 0.0, %v657
          %v659 = vpop.f32.mrf.mxu0
          %v660 = vadd.f32 0.0, %v659
          %661 = vdwg.mxu0
          %v664 = vunpack.c.l.b16 %v606
          %v665 = vunpack.c.l.b16 %v607
          %v666 = vpack.c.b16 %v665, %v664
          %v668 = vunpack.c.l.b16 %v595
          %v669 = vunpack.c.h.b16 %v595
          %v670 = vpack.c.b16 %v668, %v668
          %v671 = vpack.c.b16 %v669, %v669
          %v673 = vsel %vm623, %v666, 0
          %v676 = vsel %vm627, %v670, 0
          %v679 = vsel %vm627, %v671, 0
          %681 = vmatpush.bf16.msra.mxu0 0
          %682 = vmatpush.bf16.msra.mxu0 0
          %683 = vmatpush.bf16.msra.mxu0 0
          %684 = vmatpush.bf16.msra.mxu0 0
          %685 = vmatpush.bf16.msra.mxu0 0
          %686 = vmatpush.bf16.msra.mxu0 0
          %687 = vmatpush.bf16.msra.mxu0 0
          %688 = vmatpush.bf16.msra.mxu0 %v676
          %689 = vmatmul.bf16.gmra.mxu0 %v673
          %v690 = vpop.f32.mrf.mxu0
          %v691 = vadd.f32 %v644, %v690
          %v692 = vpop.f32.mrf.mxu0
          %v693 = vadd.f32 %v646, %v692
          %694 = vdwg.mxu0
          %695 = vmatpush.bf16.msra.mxu0 0
          %696 = vmatpush.bf16.msra.mxu0 0
          %697 = vmatpush.bf16.msra.mxu0 0
          %698 = vmatpush.bf16.msra.mxu0 0
          %699 = vmatpush.bf16.msra.mxu0 0
          %700 = vmatpush.bf16.msra.mxu0 0
          %701 = vmatpush.bf16.msra.mxu0 0
          %702 = vmatpush.bf16.msra.mxu0 %v679
          %703 = vmatmul.bf16.gmra.mxu0 %v673
          %v704 = vpop.f32.mrf.mxu0
          %v705 = vadd.f32 %v658, %v704
          %v706 = vpop.f32.mrf.mxu0
          %v707 = vadd.f32 %v660, %v706
          %708 = vdwg.mxu0
          %s709 = smul.addr %s596, 8
          %s710 = scalar_lea.vmem [#allocation2], %s709
          %711 = vst [vmem:[%s710] sm:$0xff] %v691
          %712 = vst [vmem:[%s710 + $0x8] sm:$0xff] %v705
          %713 = vst [vmem:[%s710 + $0x10] sm:$0xff] %v693
          %714 = vst [vmem:[%s710 + $0x18] sm:$0xff] %v707
        $region64: #{tpu_custom_call.1} parent=55 // pred_fallthru
          _
        %p715 = scmp.eq.s32.totalorder %s26, 1
        // Predicated region
        $region65: #{tpu_custom_call.1} parent=55 // pred_check
          %p716 = pneg %p715
        $region66: #{tpu_custom_call.1} parent=55 // pred_check_branch
          %718 = sbr.rel (%p716) target = $region68
        $region67: #{tpu_custom_call.1} parent=55 // pred_region
          %v719 = vld [vmem:[#allocation5] sm:$0xff]
          %v721 = vunpack.c.l.b16 %v719
          %v722 = vunpack.c.h.b16 %v719
          %v723 = vpack.c.b16 %v721, %v721
          %v724 = vpack.c.b16 %v722, %v722
          %v759 = vunpack.c.l.b16 %v338
          %v760 = vunpack.c.h.b16 %v338
          %v761 = vunpack.c.l.b16 %v339
          %v762 = vunpack.c.h.b16 %v339
          %v763 = vunpack.c.l.b16 %v340
          %v764 = vunpack.c.h.b16 %v340
          %v765 = vunpack.c.l.b16 %v341
          %v766 = vunpack.c.h.b16 %v341
          %v767 = vunpack.c.l.b16 %v342
          %v768 = vunpack.c.h.b16 %v342
          %v769 = vunpack.c.l.b16 %v343
          %v770 = vunpack.c.h.b16 %v343
          %v771 = vunpack.c.l.b16 %v344
          %v772 = vunpack.c.h.b16 %v344
          %v773 = vunpack.c.l.b16 %v345
          %v774 = vunpack.c.h.b16 %v345
          %v775 = vunpack.c.l.b16 %v346
          %v776 = vunpack.c.h.b16 %v346
          %v777 = vunpack.c.l.b16 %v347
          %v778 = vunpack.c.h.b16 %v347
          %v779 = vunpack.c.l.b16 %v348
          %v780 = vunpack.c.h.b16 %v348
          %v781 = vunpack.c.l.b16 %v349
          %v782 = vunpack.c.h.b16 %v349
          %v783 = vunpack.c.l.b16 %v350
          %v784 = vunpack.c.h.b16 %v350
          %v785 = vunpack.c.l.b16 %v351
          %v786 = vunpack.c.h.b16 %v351
          %v787 = vunpack.c.l.b16 %v352
          %v788 = vunpack.c.h.b16 %v352
          %v789 = vunpack.c.l.b16 %v353
          %v790 = vunpack.c.h.b16 %v353
          %v791 = vunpack.c.l.b16 %v354
          %v792 = vunpack.c.h.b16 %v354
          %v793 = vunpack.c.l.b16 %v355
          %v794 = vunpack.c.h.b16 %v355
          %v795 = vunpack.c.l.b16 %v356
          %v796 = vunpack.c.h.b16 %v356
          %v797 = vunpack.c.l.b16 %v357
          %v798 = vunpack.c.h.b16 %v357
          %v799 = vunpack.c.l.b16 %v358
          %v800 = vunpack.c.h.b16 %v358
          %v801 = vunpack.c.l.b16 %v359
          %v802 = vunpack.c.h.b16 %v359
          %v803 = vunpack.c.l.b16 %v360
          %v804 = vunpack.c.h.b16 %v360
          %v805 = vunpack.c.l.b16 %v361
          %v806 = vunpack.c.h.b16 %v361
          %v807 = vunpack.c.l.b16 %v362
          %v808 = vunpack.c.h.b16 %v362
          %v809 = vunpack.c.l.b16 %v363
          %v810 = vunpack.c.h.b16 %v363
          %v811 = vunpack.c.l.b16 %v364
          %v812 = vunpack.c.h.b16 %v364
          %v813 = vunpack.c.l.b16 %v365
          %v814 = vunpack.c.h.b16 %v365
          %v815 = vunpack.c.l.b16 %v366
          %v816 = vunpack.c.h.b16 %v366
          %v817 = vunpack.c.l.b16 %v367
          %v818 = vunpack.c.h.b16 %v367
          %v819 = vunpack.c.l.b16 %v368
          %v820 = vunpack.c.h.b16 %v368
          %v821 = vunpack.c.l.b16 %v369
          %v822 = vunpack.c.h.b16 %v369
          %v823 = vpack.c.b16 %v761, %v759
          %v824 = vpack.c.b16 %v762, %v760
          %v825 = vpack.c.b16 %v765, %v763
          %v826 = vpack.c.b16 %v766, %v764
          %v827 = vpack.c.b16 %v769, %v767
          %v828 = vpack.c.b16 %v770, %v768
          %v829 = vpack.c.b16 %v773, %v771
          %v830 = vpack.c.b16 %v774, %v772
          %v831 = vpack.c.b16 %v777, %v775
          %v832 = vpack.c.b16 %v778, %v776
          %v833 = vpack.c.b16 %v781, %v779
          %v834 = vpack.c.b16 %v782, %v780
          %v835 = vpack.c.b16 %v785, %v783
          %v836 = vpack.c.b16 %v786, %v784
          %v837 = vpack.c.b16 %v789, %v787
          %v838 = vpack.c.b16 %v790, %v788
          %v839 = vpack.c.b16 %v793, %v791
          %v840 = vpack.c.b16 %v794, %v792
          %v841 = vpack.c.b16 %v797, %v795
          %v842 = vpack.c.b16 %v798, %v796
          %v843 = vpack.c.b16 %v801, %v799
          %v844 = vpack.c.b16 %v802, %v800
          %v845 = vpack.c.b16 %v805, %v803
          %v846 = vpack.c.b16 %v806, %v804
          %v847 = vpack.c.b16 %v809, %v807
          %v848 = vpack.c.b16 %v810, %v808
          %v849 = vpack.c.b16 %v813, %v811
          %v850 = vpack.c.b16 %v814, %v812
          %v851 = vpack.c.b16 %v817, %v815
          %v852 = vpack.c.b16 %v818, %v816
          %v853 = vpack.c.b16 %v821, %v819
          %v854 = vpack.c.b16 %v822, %v820
          %887 = vmatpush.bf16.msra.mxu0 %v837
          %888 = vmatpush.bf16.msra.mxu0 %v835
          %889 = vmatpush.bf16.msra.mxu0 %v833
          %890 = vmatpush.bf16.msra.mxu0 %v831
          %891 = vmatpush.bf16.msra.mxu0 %v829
          %892 = vmatpush.bf16.msra.mxu0 %v827
          %893 = vmatpush.bf16.msra.mxu0 %v825
          %894 = vmatpush.bf16.msra.mxu0 %v823
          %895 = vmatmul.bf16.gmra.mxu0 %v723
          %v896 = vpop.f32.mrf.mxu0
          %v897 = vadd.f32 0.0, %v896
          %v898 = vpop.f32.mrf.mxu0
          %899 = vdwg.mxu0
          %900 = vmatpush.bf16.msra.mxu0 %v853
          %901 = vmatpush.bf16.msra.mxu0 %v851
          %902 = vmatpush.bf16.msra.mxu0 %v849
          %903 = vmatpush.bf16.msra.mxu0 %v847
          %904 = vmatpush.bf16.msra.mxu0 %v845
          %905 = vmatpush.bf16.msra.mxu0 %v843
          %906 = vmatpush.bf16.msra.mxu0 %v841
          %907 = vmatpush.bf16.msra.mxu0 %v839
          %908 = vmatmul.bf16.gmra.mxu0 %v724
          %v909 = vpop.f32.mrf.mxu0
          %v910 = vadd.f32 %v897, %v909
          %v911 = vpop.f32.mrf.mxu0
          %912 = vdwg.mxu0
          %913 = vmatpush.bf16.msra.mxu0 %v838
          %914 = vmatpush.bf16.msra.mxu0 %v836
          %915 = vmatpush.bf16.msra.mxu0 %v834
          %916 = vmatpush.bf16.msra.mxu0 %v832
          %917 = vmatpush.bf16.msra.mxu0 %v830
          %918 = vmatpush.bf16.msra.mxu0 %v828
          %919 = vmatpush.bf16.msra.mxu0 %v826
          %920 = vmatpush.bf16.msra.mxu0 %v824
          %921 = vmatmul.bf16.gmra.mxu0 %v723
          %v922 = vpop.f32.mrf.mxu0
          %v923 = vadd.f32 0.0, %v922
          %v924 = vpop.f32.mrf.mxu0
          %925 = vdwg.mxu0
          %926 = vmatpush.bf16.msra.mxu0 %v854
          %927 = vmatpush.bf16.msra.mxu0 %v852
          %928 = vmatpush.bf16.msra.mxu0 %v850
          %929 = vmatpush.bf16.msra.mxu0 %v848
          %930 = vmatpush.bf16.msra.mxu0 %v846
          %931 = vmatpush.bf16.msra.mxu0 %v844
          %932 = vmatpush.bf16.msra.mxu0 %v842
          %933 = vmatpush.bf16.msra.mxu0 %v840
          %934 = vmatmul.bf16.gmra.mxu0 %v724
          %v935 = vpop.f32.mrf.mxu0
          %v936 = vadd.f32 %v923, %v935
          %v937 = vpop.f32.mrf.mxu0
          %938 = vdwg.mxu0
          %v939 = vmul.f32 %v910, 2.0
          %v940 = vmul.f32 %v936, 2.0
          %s941 = sshra.s32 %s370, 7
          %s942 = sand.u32 %s370, 127
          %s943 = smul.addr %s941, 8
          %s944 = scalar_lea.vmem %s1, %s943
          %v945 = vld [vmem:[%s944] sm:$0xff]
          %v946 = vld [vmem:[%s944 + $0x8] sm:$0xff]
          %v947 = vsub.f32 %v939, %v945
          %v948 = vsub.f32 %v940, %v946
          %v949 = vpack.c.bf16 %v947, %v947
          %v950 = vpack.c.bf16 %v948, %v948
          %s951 = scalar_lea.vmem %s3, 16
          %v952 = vld [vmem:[%s951] sm:$0xf]
          %v953 = vld [vmem:[%s951 + $0x4] sm:$0xf]
          %v956 = vunpack.c.l.b16 %v952
          %v957 = vunpack.c.l.b16 %v953
          %v958 = vpack.c.b16 %v957, %v956
          %vm959 = vcmask 64512
          %v961 = vsel %vm959, %v958, 0
          %vm963 = vcmask 1043456
          %v965 = vsel %vm963, %v949, 0
          %v968 = vsel %vm963, %v950, 0
          %970 = vmatpush.bf16.msra.mxu0 0
          %971 = vmatpush.bf16.msra.mxu0 0
          %972 = vmatpush.bf16.msra.mxu0 0
          %973 = vmatpush.bf16.msra.mxu0 0
          %974 = vmatpush.bf16.msra.mxu0 0
          %975 = vmatpush.bf16.msra.mxu0 0
          %976 = vmatpush.bf16.msra.mxu0 0
          %977 = vmatpush.bf16.msra.mxu0 %v965
          %978 = vmatmul.bf16.gmra.mxu0 %v961
          %v979 = vpop.f32.mrf.mxu0
          %v980 = vadd.f32 0.0, %v979
          %v981 = vpop.f32.mrf.mxu0
          %v982 = vadd.f32 0.0, %v981
          %983 = vdwg.mxu0
          %984 = vmatpush.bf16.msra.mxu0 0
          %985 = vmatpush.bf16.msra.mxu0 0
          %986 = vmatpush.bf16.msra.mxu0 0
          %987 = vmatpush.bf16.msra.mxu0 0
          %988 = vmatpush.bf16.msra.mxu0 0
          %989 = vmatpush.bf16.msra.mxu0 0
          %990 = vmatpush.bf16.msra.mxu0 0
          %991 = vmatpush.bf16.msra.mxu0 %v968
          %992 = vmatmul.bf16.gmra.mxu0 %v961
          %v993 = vpop.f32.mrf.mxu0
          %v994 = vadd.f32 0.0, %v993
          %v995 = vpop.f32.mrf.mxu0
          %v996 = vadd.f32 0.0, %v995
          %997 = vdwg.mxu0
          %s998 = smul.addr %s941, 8
          %s999 = scalar_lea.vmem [#allocation2], %s998
          %v1000 = vld [vmem:[%s999] sm:$0xff]
          %v1001 = vld [vmem:[%s999 + $0x8] sm:$0xff]
          %v1002 = vld [vmem:[%s999 + $0x10] sm:$0xff]
          %v1003 = vld [vmem:[%s999 + $0x18] sm:$0xff]
          %v1004 = vadd.f32 %v1000, %v980
          %v1005 = vadd.f32 %v1001, %v994
          %v1006 = vadd.f32 %v1002, %v982
          %v1007 = vadd.f32 %v1003, %v996
          %1008 = vst [vmem:[%s999] sm:$0xff] %v1004
          %1009 = vst [vmem:[%s999 + $0x8] sm:$0xff] %v1005
          %1010 = vst [vmem:[%s999 + $0x10] sm:$0xff] %v1006
          %1011 = vst [vmem:[%s999 + $0x18] sm:$0xff] %v1007
        $region68: #{tpu_custom_call.1} parent=55 // pred_fallthru
          _
        %p1012 = scmp.eq.s32.totalorder %s26, 2
        // Predicated region
        $region69: #{tpu_custom_call.1} parent=55 // pred_check
          %p1013 = pneg %p1012
        $region70: #{tpu_custom_call.1} parent=55 // pred_check_branch
          %1015 = sbr.rel (%p1013) target = $region72
        $region71: #{tpu_custom_call.1} parent=55 // pred_region
          %p1016 = scmp.eq.s32.totalorder %s27, 0
          // Predicated region
          $region73: #{tpu_custom_call.1} parent=71 // pred_check
            %p1017 = pneg %p1016
          $region74: #{tpu_custom_call.1} parent=71 // pred_check_branch
            %1019 = sbr.rel (%p1017) target = $region76
          $region75: #{tpu_custom_call.1} parent=71 // pred_region
            %v1020 = vld [vmem:[#allocation2] sm:$0xff]
            %v1021 = vld [vmem:[#allocation2 + $0x8] sm:$0xff]
            %v1022 = vld [vmem:[#allocation2 + $0x10] sm:$0xff]
            %v1023 = vld [vmem:[#allocation2 + $0x18] sm:$0xff]
            %v1024 = vadd.f32 %v1020, %v1021
            %1025 = vadd.xlane.f32.xlu0 %v1024
            %v1026 = vpop.xlane.xlu0 %1025
            %v1027 = vadd.f32 %v1022, %v1023
            %1028 = vadd.xlane.f32.xlu0 %v1027
            %v1029 = vpop.xlane.xlu0 %1028
            %v1030 = vadd.f32 %v1026, 0.0
            %v1031 = vadd.f32 %v1030, %v1029
            %v1032 = vrcp.pop 512.0
            %v1033 = vmul.f32 512.0, %v1032
            %v1034 = vsub.f32 1.0, %v1033
            %v1035 = vmul.f32 %v1032, %v1034
            %v1036 = vadd.f32 %v1032, %v1035
            %vm1037 = vweird.f32 %v1032
            %v1038 = vsel %vm1037, %v1032, %v1036
            %v1039 = vmul.f32 %v1031, %v1038
            %1041 = vset.pattern.permute.xlu0 0
            %1042 = vperm.xlu0 %1041, %v1039
            %v1043 = vpop.permute.xlu0 %1042
            %v1045 = vsub.f32 %v1020, %v1043
            %v1046 = vsub.f32 %v1021, %v1043
            %v1047 = vsub.f32 %v1022, %v1043
            %v1048 = vsub.f32 %v1023, %v1043
            %v1049 = vmul.f32 %v1045, %v1045
            %v1050 = vmul.f32 %v1046, %v1046
            %v1051 = vmul.f32 %v1047, %v1047
            %v1052 = vmul.f32 %v1048, %v1048
            %v1053 = vadd.f32 %v1049, %v1050
            %1054 = vadd.xlane.f32.xlu0 %v1053
            %v1055 = vpop.xlane.xlu0 %1054
            %v1056 = vadd.f32 %v1051, %v1052
            %1057 = vadd.xlane.f32.xlu0 %v1056
            %v1058 = vpop.xlane.xlu0 %1057
            %v1059 = vadd.f32 %v1055, 0.0
            %v1060 = vadd.f32 %v1059, %v1058
            %v1061 = vmul.f32 %v1060, %v1038
            %v1062 = vld [vmem:[%s4] sm:$0xff]
            %v1063 = vld [vmem:[%s4 + $0x8] sm:$0xff]
            %v1064 = vadd.f32 %v1061, 1e-05
            %v1065 = vrsqrt.pop %v1064
            %v1066 = vmul.f32 %v1065, %v1064
            %v1067 = vmul.f32 %v1066, %v1065
            %v1068 = vmul.f32 0.5, %v1067
            %v1069 = vsub.f32 1.5, %v1068
            %v1070 = vmul.f32 %v1065, %v1069
            %vm1071 = vweird.f32 %v1064
            %vm1072 = vweird.f32 %v1065
            %vm1073 = vmor %vm1071, %vm1072
            %v1074 = vsel %vm1073, %v1065, %v1070
            %v1075 = vmul.f32 %v1062, %v1074
            %v1076 = vmul.f32 %v1063, %v1074
            %1078 = vset.pattern.permute.xlu0 0
            %1079 = vperm.xlu0 %1078, %v1075
            %v1080 = vpop.permute.xlu0 %1079
            %1083 = vset.pattern.permute.xlu0 0
            %1084 = vperm.xlu0 %1083, %v1076
            %v1085 = vpop.permute.xlu0 %1084
            %v1087 = vmul.f32 %v1045, %v1080
            %v1088 = vmul.f32 %v1046, %v1080
            %v1089 = vmul.f32 %v1047, %v1085
            %v1090 = vmul.f32 %v1048, %v1085
            %v1091 = vld [vmem:[%s5] sm:$0xff]
            %v1092 = vld [vmem:[%s5 + $0x8] sm:$0xff]
            %1094 = vset.pattern.permute.xlu0 0
            %1095 = vperm.xlu0 %1094, %v1091
            %v1096 = vpop.permute.xlu0 %1095
            %1099 = vset.pattern.permute.xlu0 0
            %1100 = vperm.xlu0 %1099, %v1092
            %v1101 = vpop.permute.xlu0 %1100
            %v1103 = vadd.f32 %v1087, %v1096
            %v1104 = vadd.f32 %v1088, %v1096
            %v1105 = vadd.f32 %v1089, %v1101
            %v1106 = vadd.f32 %v1090, %v1101
            %v1107 = vmax.f32 %v1103, 0.0
            %v1108 = vmax.f32 %v1104, 0.0
            %v1109 = vmax.f32 %v1105, 0.0
            %v1110 = vmax.f32 %v1106, 0.0
            %1111 = vst [vmem:[#allocation2] sm:$0xff] %v1107
            %1112 = vst [vmem:[#allocation2 + $0x8] sm:$0xff] %v1108
            %1113 = vst [vmem:[#allocation2 + $0x10] sm:$0xff] %v1109
            %1114 = vst [vmem:[#allocation2 + $0x18] sm:$0xff] %v1110
            %v1115 = vpack.c.bf16 %v1108, %v1107
            %v1116 = vpack.c.bf16 %v1110, %v1109
            %1117 = vst [vmem:[#allocation3] sm:$0xff] %v1115
            %1118 = vst [vmem:[#allocation3 + $0x8] sm:$0xff] %v1116
          $region76: #{tpu_custom_call.1} parent=71 // pred_fallthru
            _
          %v1119 = vld [vmem:[#allocation3] sm:$0xff]
          %v1120 = vld [vmem:[#allocation3 + $0x8] sm:$0xff]
          %v1123 = vunpack.c.l.b16 %v1119
          %v1124 = vunpack.c.h.b16 %v1119
          %v1125 = vunpack.c.l.b16 %v1120
          %v1126 = vunpack.c.h.b16 %v1120
          %v1127 = vpack.c.b16 %v1125, %v1123
          %v1128 = vpack.c.b16 %v1126, %v1124
          %v1163 = vunpack.c.l.b16 %v338
          %v1164 = vunpack.c.h.b16 %v338
          %v1165 = vunpack.c.l.b16 %v339
          %v1166 = vunpack.c.h.b16 %v339
          %v1167 = vunpack.c.l.b16 %v340
          %v1168 = vunpack.c.h.b16 %v340
          %v1169 = vunpack.c.l.b16 %v341
          %v1170 = vunpack.c.h.b16 %v341
          %v1171 = vunpack.c.l.b16 %v342
          %v1172 = vunpack.c.h.b16 %v342
          %v1173 = vunpack.c.l.b16 %v343
          %v1174 = vunpack.c.h.b16 %v343
          %v1175 = vunpack.c.l.b16 %v344
          %v1176 = vunpack.c.h.b16 %v344
          %v1177 = vunpack.c.l.b16 %v345
          %v1178 = vunpack.c.h.b16 %v345
          %v1179 = vunpack.c.l.b16 %v346
          %v1180 = vunpack.c.h.b16 %v346
          %v1181 = vunpack.c.l.b16 %v347
          %v1182 = vunpack.c.h.b16 %v347
          %v1183 = vunpack.c.l.b16 %v348
          %v1184 = vunpack.c.h.b16 %v348
          %v1185 = vunpack.c.l.b16 %v349
          %v1186 = vunpack.c.h.b16 %v349
          %v1187 = vunpack.c.l.b16 %v350
          %v1188 = vunpack.c.h.b16 %v350
          %v1189 = vunpack.c.l.b16 %v351
          %v1190 = vunpack.c.h.b16 %v351
          %v1191 = vunpack.c.l.b16 %v352
          %v1192 = vunpack.c.h.b16 %v352
          %v1193 = vunpack.c.l.b16 %v353
          %v1194 = vunpack.c.h.b16 %v353
          %v1195 = vunpack.c.l.b16 %v354
          %v1196 = vunpack.c.h.b16 %v354
          %v1197 = vunpack.c.l.b16 %v355
          %v1198 = vunpack.c.h.b16 %v355
          %v1199 = vunpack.c.l.b16 %v356
          %v1200 = vunpack.c.h.b16 %v356
          %v1201 = vunpack.c.l.b16 %v357
          %v1202 = vunpack.c.h.b16 %v357
          %v1203 = vunpack.c.l.b16 %v358
          %v1204 = vunpack.c.h.b16 %v358
          %v1205 = vunpack.c.l.b16 %v359
          %v1206 = vunpack.c.h.b16 %v359
          %v1207 = vunpack.c.l.b16 %v360
          %v1208 = vunpack.c.h.b16 %v360
          %v1209 = vunpack.c.l.b16 %v361
          %v1210 = vunpack.c.h.b16 %v361
          %v1211 = vunpack.c.l.b16 %v362
          %v1212 = vunpack.c.h.b16 %v362
          %v1213 = vunpack.c.l.b16 %v363
          %v1214 = vunpack.c.h.b16 %v363
          %v1215 = vunpack.c.l.b16 %v364
          %v1216 = vunpack.c.h.b16 %v364
          %v1217 = vunpack.c.l.b16 %v365
          %v1218 = vunpack.c.h.b16 %v365
          %v1219 = vunpack.c.l.b16 %v366
          %v1220 = vunpack.c.h.b16 %v366
          %v1221 = vunpack.c.l.b16 %v367
          %v1222 = vunpack.c.h.b16 %v367
          %v1223 = vunpack.c.l.b16 %v368
          %v1224 = vunpack.c.h.b16 %v368
          %v1225 = vunpack.c.l.b16 %v369
          %v1226 = vunpack.c.h.b16 %v369
          %v1227 = vpack.c.b16 %v1165, %v1163
          %v1228 = vpack.c.b16 %v1166, %v1164
          %v1229 = vpack.c.b16 %v1169, %v1167
          %v1230 = vpack.c.b16 %v1170, %v1168
          %v1231 = vpack.c.b16 %v1173, %v1171
          %v1232 = vpack.c.b16 %v1174, %v1172
          %v1233 = vpack.c.b16 %v1177, %v1175
          %v1234 = vpack.c.b16 %v1178, %v1176
          %v1235 = vpack.c.b16 %v1181, %v1179
          %v1236 = vpack.c.b16 %v1182, %v1180
          %v1237 = vpack.c.b16 %v1185, %v1183
          %v1238 = vpack.c.b16 %v1186, %v1184
          %v1239 = vpack.c.b16 %v1189, %v1187
          %v1240 = vpack.c.b16 %v1190, %v1188
          %v1241 = vpack.c.b16 %v1193, %v1191
          %v1242 = vpack.c.b16 %v1194, %v1192
          %v1243 = vpack.c.b16 %v1197, %v1195
          %v1244 = vpack.c.b16 %v1198, %v1196
          %v1245 = vpack.c.b16 %v1201, %v1199
          %v1246 = vpack.c.b16 %v1202, %v1200
          %v1247 = vpack.c.b16 %v1205, %v1203
          %v1248 = vpack.c.b16 %v1206, %v1204
          %v1249 = vpack.c.b16 %v1209, %v1207
          %v1250 = vpack.c.b16 %v1210, %v1208
          %v1251 = vpack.c.b16 %v1213, %v1211
          %v1252 = vpack.c.b16 %v1214, %v1212
          %v1253 = vpack.c.b16 %v1217, %v1215
          %v1254 = vpack.c.b16 %v1218, %v1216
          %v1255 = vpack.c.b16 %v1221, %v1219
          %v1256 = vpack.c.b16 %v1222, %v1220
          %v1257 = vpack.c.b16 %v1225, %v1223
          %v1258 = vpack.c.b16 %v1226, %v1224
          %1291 = vmatpush.bf16.msra.mxu0 %v1241
          %1292 = vmatpush.bf16.msra.mxu0 %v1239
          %1293 = vmatpush.bf16.msra.mxu0 %v1237
          %1294 = vmatpush.bf16.msra.mxu0 %v1235
          %1295 = vmatpush.bf16.msra.mxu0 %v1233
          %1296 = vmatpush.bf16.msra.mxu0 %v1231
          %1297 = vmatpush.bf16.msra.mxu0 %v1229
          %1298 = vmatpush.bf16.msra.mxu0 %v1227
          %1299 = vmatmul.bf16.gmra.mxu0 %v1127
          %v1300 = vpop.f32.mrf.mxu0
          %v1301 = vadd.f32 0.0, %v1300
          %v1302 = vpop.f32.mrf.mxu0
          %v1303 = vadd.f32 0.0, %v1302
          %1304 = vdwg.mxu0
          %1305 = vmatpush.bf16.msra.mxu0 %v1257
          %1306 = vmatpush.bf16.msra.mxu0 %v1255
          %1307 = vmatpush.bf16.msra.mxu0 %v1253
          %1308 = vmatpush.bf16.msra.mxu0 %v1251
          %1309 = vmatpush.bf16.msra.mxu0 %v1249
          %1310 = vmatpush.bf16.msra.mxu0 %v1247
          %1311 = vmatpush.bf16.msra.mxu0 %v1245
          %1312 = vmatpush.bf16.msra.mxu0 %v1243
          %1313 = vmatmul.bf16.gmra.mxu0 %v1128
          %v1314 = vpop.f32.mrf.mxu0
          %v1315 = vadd.f32 %v1301, %v1314
          %v1316 = vpop.f32.mrf.mxu0
          %v1317 = vadd.f32 %v1303, %v1316
          %1318 = vdwg.mxu0
          %1319 = vmatpush.bf16.msra.mxu0 %v1242
          %1320 = vmatpush.bf16.msra.mxu0 %v1240
          %1321 = vmatpush.bf16.msra.mxu0 %v1238
          %1322 = vmatpush.bf16.msra.mxu0 %v1236
          %1323 = vmatpush.bf16.msra.mxu0 %v1234
          %1324 = vmatpush.bf16.msra.mxu0 %v1232
          %1325 = vmatpush.bf16.msra.mxu0 %v1230
          %1326 = vmatpush.bf16.msra.mxu0 %v1228
          %1327 = vmatmul.bf16.gmra.mxu0 %v1127
          %v1328 = vpop.f32.mrf.mxu0
          %v1329 = vadd.f32 0.0, %v1328
          %v1330 = vpop.f32.mrf.mxu0
          %v1331 = vadd.f32 0.0, %v1330
          %1332 = vdwg.mxu0
          %1333 = vmatpush.bf16.msra.mxu0 %v1258
          %1334 = vmatpush.bf16.msra.mxu0 %v1256
          %1335 = vmatpush.bf16.msra.mxu0 %v1254
          %1336 = vmatpush.bf16.msra.mxu0 %v1252
          %1337 = vmatpush.bf16.msra.mxu0 %v1250
          %1338 = vmatpush.bf16.msra.mxu0 %v1248
          %1339 = vmatpush.bf16.msra.mxu0 %v1246
          %1340 = vmatpush.bf16.msra.mxu0 %v1244
          %1341 = vmatmul.bf16.gmra.mxu0 %v1128
          %v1342 = vpop.f32.mrf.mxu0
          %v1343 = vadd.f32 %v1329, %v1342
          %v1344 = vpop.f32.mrf.mxu0
          %v1345 = vadd.f32 %v1331, %v1344
          %1346 = vdwg.mxu0
          %v1347 = vpack.c.bf16 %v1343, %v1315
          %v1348 = vpack.c.bf16 %v1345, %v1317
          %s1349 = sshra.s32 %s370, 7
          %s1350 = sand.u32 %s370, 127
          %s1351 = smul.addr %s1349, 8
          %s1352 = scalar_lea.vmem [#allocation6], %s1351
          %1353 = vst [vmem:[%s1352] sm:$0xff] %v1315
          %1354 = vst [vmem:[%s1352 + $0x8] sm:$0xff] %v1343
          %1355 = vst [vmem:[%s1352 + $0x10] sm:$0xff] %v1317
          %1356 = vst [vmem:[%s1352 + $0x18] sm:$0xff] %v1345
          %s1357 = smul.addr %s1349, 4
          %s1358 = scalar_lea.vmem [#allocation7], %s1357
          %1359 = vst [vmem:[%s1358] sm:$0xff] %v1347
          %1360 = vst [vmem:[%s1358 + $0x8] sm:$0xff] %v1348
          %s1361 = scalar_lea.vmem %s6, 16
          %v1362 = vld [vmem:[%s1361] sm:$0xf]
          %v1363 = vld [vmem:[%s1361 + $0x4] sm:$0xf]
          %v1364 = vld [vmem:[%s1361 + $0x8] sm:$0xf]
          %v1365 = vld [vmem:[%s1361 + $0xc] sm:$0xf]
          %v1366 = vld [vmem:[%s6] sm:$0xf]
          %v1367 = vld [vmem:[%s6 + $0x4] sm:$0xf]
          %v1368 = vld [vmem:[%s6 + $0x8] sm:$0xf]
          %v1369 = vld [vmem:[%s6 + $0xc] sm:$0xf]
          %s1370 = smul.addr %s1349, 4
          %s1371 = scalar_lea.vmem [#allocation3], %s1370
          %v1372 = vld [vmem:[%s1371] sm:$0xff]
          %v1373 = vld [vmem:[%s1371 + $0x8] sm:$0xff]
          %v1378 = vunpack.c.l.b16 %v1366
          %v1379 = vunpack.c.l.b16 %v1367
          %v1380 = vunpack.c.l.b16 %v1368
          %v1381 = vunpack.c.l.b16 %v1369
          %v1382 = vpack.c.b16 %v1379, %v1378
          %v1383 = vpack.c.b16 %v1381, %v1380
          %v1386 = vunpack.c.l.b16 %v1372
          %v1387 = vunpack.c.h.b16 %v1372
          %v1388 = vunpack.c.l.b16 %v1373
          %v1389 = vunpack.c.h.b16 %v1373
          %v1390 = vpack.c.b16 %v1388, %v1386
          %v1391 = vpack.c.b16 %v1389, %v1387
          %vm1394 = vcmask 130048
          %v1396 = vsel %vm1394, %v1382, 0
          %v1399 = vsel %vm1394, %v1383, 0
          %1401 = vmatpush.bf16.msra.mxu0 0
          %1402 = vmatpush.bf16.msra.mxu0 0
          %1403 = vmatpush.bf16.msra.mxu0 0
          %1404 = vmatpush.bf16.msra.mxu0 0
          %1405 = vmatpush.bf16.msra.mxu0 0
          %1406 = vmatpush.bf16.msra.mxu0 0
          %1407 = vmatpush.bf16.msra.mxu0 0
          %1408 = vmatpush.bf16.msra.mxu0 %v1390
          %1409 = vmatmul.bf16.gmra.mxu0 %v1396
          %v1410 = vpop.f32.mrf.mxu0
          %v1411 = vadd.f32 0.0, %v1410
          %v1412 = vpop.f32.mrf.mxu0
          %v1413 = vadd.f32 0.0, %v1412
          %1414 = vmatmul.bf16.gmra.mxu0 %v1399
          %v1415 = vpop.f32.mrf.mxu0
          %v1416 = vadd.f32 0.0, %v1415
          %v1417 = vpop.f32.mrf.mxu0
          %v1418 = vadd.f32 0.0, %v1417
          %1419 = vdwg.mxu0
          %1420 = vmatpush.bf16.msra.mxu0 0
          %1421 = vmatpush.bf16.msra.mxu0 0
          %1422 = vmatpush.bf16.msra.mxu0 0
          %1423 = vmatpush.bf16.msra.mxu0 0
          %1424 = vmatpush.bf16.msra.mxu0 0
          %1425 = vmatpush.bf16.msra.mxu0 0
          %1426 = vmatpush.bf16.msra.mxu0 0
          %1427 = vmatpush.bf16.msra.mxu0 %v1391
          %1428 = vmatmul.bf16.gmra.mxu0 %v1396
          %v1429 = vpop.f32.mrf.mxu0
          %v1430 = vadd.f32 0.0, %v1429
          %v1431 = vpop.f32.mrf.mxu0
          %v1432 = vadd.f32 0.0, %v1431
          %1433 = vmatmul.bf16.gmra.mxu0 %v1399
          %v1434 = vpop.f32.mrf.mxu0
          %v1435 = vadd.f32 0.0, %v1434
          %v1436 = vpop.f32.mrf.mxu0
          %v1437 = vadd.f32 0.0, %v1436
          %1438 = vdwg.mxu0
          %v1443 = vunpack.c.l.b16 %v1362
          %v1444 = vunpack.c.l.b16 %v1363
          %v1445 = vunpack.c.l.b16 %v1364
          %v1446 = vunpack.c.l.b16 %v1365
          %v1447 = vpack.c.b16 %v1444, %v1443
          %v1448 = vpack.c.b16 %v1446, %v1445
          %v1451 = vunpack.c.l.b16 %v1347
          %v1452 = vunpack.c.h.b16 %v1347
          %v1453 = vunpack.c.l.b16 %v1348
          %v1454 = vunpack.c.h.b16 %v1348
          %v1455 = vpack.c.b16 %v1453, %v1451
          %v1456 = vpack.c.b16 %v1454, %v1452
          %v1460 = vsel %vm1394, %v1447, 0
          %v1463 = vsel %vm1394, %v1448, 0
          %1465 = vmatpush.bf16.msra.mxu0 0
          %1466 = vmatpush.bf16.msra.mxu0 0
          %1467 = vmatpush.bf16.msra.mxu0 0
          %1468 = vmatpush.bf16.msra.mxu0 0
          %1469 = vmatpush.bf16.msra.mxu0 0
          %1470 = vmatpush.bf16.msra.mxu0 0
          %1471 = vmatpush.bf16.msra.mxu0 0
          %1472 = vmatpush.bf16.msra.mxu0 %v1455
          %1473 = vmatmul.bf16.gmra.mxu0 %v1460
          %v1474 = vpop.f32.mrf.mxu0
          %v1475 = vadd.f32 %v1411, %v1474
          %v1476 = vpop.f32.mrf.mxu0
          %v1477 = vadd.f32 %v1413, %v1476
          %1478 = vmatmul.bf16.gmra.mxu0 %v1463
          %v1479 = vpop.f32.mrf.mxu0
          %v1480 = vadd.f32 %v1416, %v1479
          %v1481 = vpop.f32.mrf.mxu0
          %v1482 = vadd.f32 %v1418, %v1481
          %1483 = vdwg.mxu0
          %1484 = vmatpush.bf16.msra.mxu0 0
          %1485 = vmatpush.bf16.msra.mxu0 0
          %1486 = vmatpush.bf16.msra.mxu0 0
          %1487 = vmatpush.bf16.msra.mxu0 0
          %1488 = vmatpush.bf16.msra.mxu0 0
          %1489 = vmatpush.bf16.msra.mxu0 0
          %1490 = vmatpush.bf16.msra.mxu0 0
          %1491 = vmatpush.bf16.msra.mxu0 %v1456
          %1492 = vmatmul.bf16.gmra.mxu0 %v1460
          %v1493 = vpop.f32.mrf.mxu0
          %v1494 = vadd.f32 %v1430, %v1493
          %v1495 = vpop.f32.mrf.mxu0
          %v1496 = vadd.f32 %v1432, %v1495
          %1497 = vmatmul.bf16.gmra.mxu0 %v1463
          %v1498 = vpop.f32.mrf.mxu0
          %v1499 = vadd.f32 %v1435, %v1498
          %v1500 = vpop.f32.mrf.mxu0
          %v1501 = vadd.f32 %v1437, %v1500
          %1502 = vdwg.mxu0
          %s1503 = smul.addr %s1349, 8
          %s1504 = scalar_lea.vmem [#allocation11], %s1503
          %1505 = vst [vmem:[%s1504] sm:$0xff] %v1475
          %1506 = vst [vmem:[%s1504 + $0x8] sm:$0xff] %v1494
          %1507 = vst [vmem:[%s1504 + $0x10] sm:$0xff] %v1477
          %1508 = vst [vmem:[%s1504 + $0x18] sm:$0xff] %v1496
          %1509 = vst [vmem:[%s1504 + $0x20] sm:$0xff] %v1480
          %1510 = vst [vmem:[%s1504 + $0x28] sm:$0xff] %v1499
          %1511 = vst [vmem:[%s1504 + $0x30] sm:$0xff] %v1482
          %1512 = vst [vmem:[%s1504 + $0x38] sm:$0xff] %v1501
        $region72: #{tpu_custom_call.1} parent=55 // pred_fallthru
          _
        %p1513 = scmp.eq.s32.totalorder %s26, 3
        // Predicated region
        $region77: #{tpu_custom_call.1} parent=55 // pred_check
          %p1514 = pneg %p1513
        $region78: #{tpu_custom_call.1} parent=55 // pred_check_branch
          %1516 = sbr.rel (%p1514) target = $region80
        $region79: #{tpu_custom_call.1} parent=55 // pred_region
          %v1517 = vld [vmem:[#allocation7] sm:$0xff]
          %v1518 = vld [vmem:[#allocation7 + $0x8] sm:$0xff]
          %v1521 = vunpack.c.l.b16 %v1517
          %v1522 = vunpack.c.h.b16 %v1517
          %v1523 = vunpack.c.l.b16 %v1518
          %v1524 = vunpack.c.h.b16 %v1518
          %v1525 = vpack.c.b16 %v1523, %v1521
          %v1526 = vpack.c.b16 %v1524, %v1522
          %v1561 = vunpack.c.l.b16 %v338
          %v1562 = vunpack.c.h.b16 %v338
          %v1563 = vunpack.c.l.b16 %v339
          %v1564 = vunpack.c.h.b16 %v339
          %v1565 = vunpack.c.l.b16 %v340
          %v1566 = vunpack.c.h.b16 %v340
          %v1567 = vunpack.c.l.b16 %v341
          %v1568 = vunpack.c.h.b16 %v341
          %v1569 = vunpack.c.l.b16 %v342
          %v1570 = vunpack.c.h.b16 %v342
          %v1571 = vunpack.c.l.b16 %v343
          %v1572 = vunpack.c.h.b16 %v343
          %v1573 = vunpack.c.l.b16 %v344
          %v1574 = vunpack.c.h.b16 %v344
          %v1575 = vunpack.c.l.b16 %v345
          %v1576 = vunpack.c.h.b16 %v345
          %v1577 = vunpack.c.l.b16 %v346
          %v1578 = vunpack.c.h.b16 %v346
          %v1579 = vunpack.c.l.b16 %v347
          %v1580 = vunpack.c.h.b16 %v347
          %v1581 = vunpack.c.l.b16 %v348
          %v1582 = vunpack.c.h.b16 %v348
          %v1583 = vunpack.c.l.b16 %v349
          %v1584 = vunpack.c.h.b16 %v349
          %v1585 = vunpack.c.l.b16 %v350
          %v1586 = vunpack.c.h.b16 %v350
          %v1587 = vunpack.c.l.b16 %v351
          %v1588 = vunpack.c.h.b16 %v351
          %v1589 = vunpack.c.l.b16 %v352
          %v1590 = vunpack.c.h.b16 %v352
          %v1591 = vunpack.c.l.b16 %v353
          %v1592 = vunpack.c.h.b16 %v353
          %v1593 = vunpack.c.l.b16 %v354
          %v1594 = vunpack.c.h.b16 %v354
          %v1595 = vunpack.c.l.b16 %v355
          %v1596 = vunpack.c.h.b16 %v355
          %v1597 = vunpack.c.l.b16 %v356
          %v1598 = vunpack.c.h.b16 %v356
          %v1599 = vunpack.c.l.b16 %v357
          %v1600 = vunpack.c.h.b16 %v357
          %v1601 = vunpack.c.l.b16 %v358
          %v1602 = vunpack.c.h.b16 %v358
          %v1603 = vunpack.c.l.b16 %v359
          %v1604 = vunpack.c.h.b16 %v359
          %v1605 = vunpack.c.l.b16 %v360
          %v1606 = vunpack.c.h.b16 %v360
          %v1607 = vunpack.c.l.b16 %v361
          %v1608 = vunpack.c.h.b16 %v361
          %v1609 = vunpack.c.l.b16 %v362
          %v1610 = vunpack.c.h.b16 %v362
          %v1611 = vunpack.c.l.b16 %v363
          %v1612 = vunpack.c.h.b16 %v363
          %v1613 = vunpack.c.l.b16 %v364
          %v1614 = vunpack.c.h.b16 %v364
          %v1615 = vunpack.c.l.b16 %v365
          %v1616 = vunpack.c.h.b16 %v365
          %v1617 = vunpack.c.l.b16 %v366
          %v1618 = vunpack.c.h.b16 %v366
          %v1619 = vunpack.c.l.b16 %v367
          %v1620 = vunpack.c.h.b16 %v367
          %v1621 = vunpack.c.l.b16 %v368
          %v1622 = vunpack.c.h.b16 %v368
          %v1623 = vunpack.c.l.b16 %v369
          %v1624 = vunpack.c.h.b16 %v369
          %v1625 = vpack.c.b16 %v1563, %v1561
          %v1626 = vpack.c.b16 %v1564, %v1562
          %v1627 = vpack.c.b16 %v1567, %v1565
          %v1628 = vpack.c.b16 %v1568, %v1566
          %v1629 = vpack.c.b16 %v1571, %v1569
          %v1630 = vpack.c.b16 %v1572, %v1570
          %v1631 = vpack.c.b16 %v1575, %v1573
          %v1632 = vpack.c.b16 %v1576, %v1574
          %v1633 = vpack.c.b16 %v1579, %v1577
          %v1634 = vpack.c.b16 %v1580, %v1578
          %v1635 = vpack.c.b16 %v1583, %v1581
          %v1636 = vpack.c.b16 %v1584, %v1582
          %v1637 = vpack.c.b16 %v1587, %v1585
          %v1638 = vpack.c.b16 %v1588, %v1586
          %v1639 = vpack.c.b16 %v1591, %v1589
          %v1640 = vpack.c.b16 %v1592, %v1590
          %v1641 = vpack.c.b16 %v1595, %v1593
          %v1642 = vpack.c.b16 %v1596, %v1594
          %v1643 = vpack.c.b16 %v1599, %v1597
          %v1644 = vpack.c.b16 %v1600, %v1598
          %v1645 = vpack.c.b16 %v1603, %v1601
          %v1646 = vpack.c.b16 %v1604, %v1602
          %v1647 = vpack.c.b16 %v1607, %v1605
          %v1648 = vpack.c.b16 %v1608, %v1606
          %v1649 = vpack.c.b16 %v1611, %v1609
          %v1650 = vpack.c.b16 %v1612, %v1610
          %v1651 = vpack.c.b16 %v1615, %v1613
          %v1652 = vpack.c.b16 %v1616, %v1614
          %v1653 = vpack.c.b16 %v1619, %v1617
          %v1654 = vpack.c.b16 %v1620, %v1618
          %v1655 = vpack.c.b16 %v1623, %v1621
          %v1656 = vpack.c.b16 %v1624, %v1622
          %1689 = vmatpush.bf16.msra.mxu0 %v1639
          %1690 = vmatpush.bf16.msra.mxu0 %v1637
          %1691 = vmatpush.bf16.msra.mxu0 %v1635
          %1692 = vmatpush.bf16.msra.mxu0 %v1633
          %1693 = vmatpush.bf16.msra.mxu0 %v1631
          %1694 = vmatpush.bf16.msra.mxu0 %v1629
          %1695 = vmatpush.bf16.msra.mxu0 %v1627
          %1696 = vmatpush.bf16.msra.mxu0 %v1625
          %1697 = vmatmul.bf16.gmra.mxu0 %v1525
          %v1698 = vpop.f32.mrf.mxu0
          %v1699 = vadd.f32 0.0, %v1698
          %v1700 = vpop.f32.mrf.mxu0
          %v1701 = vadd.f32 0.0, %v1700
          %1702 = vdwg.mxu0
          %1703 = vmatpush.bf16.msra.mxu0 %v1655
          %1704 = vmatpush.bf16.msra.mxu0 %v1653
          %1705 = vmatpush.bf16.msra.mxu0 %v1651
          %1706 = vmatpush.bf16.msra.mxu0 %v1649
          %1707 = vmatpush.bf16.msra.mxu0 %v1647
          %1708 = vmatpush.bf16.msra.mxu0 %v1645
          %1709 = vmatpush.bf16.msra.mxu0 %v1643
          %1710 = vmatpush.bf16.msra.mxu0 %v1641
          %1711 = vmatmul.bf16.gmra.mxu0 %v1526
          %v1712 = vpop.f32.mrf.mxu0
          %v1713 = vadd.f32 %v1699, %v1712
          %v1714 = vpop.f32.mrf.mxu0
          %v1715 = vadd.f32 %v1701, %v1714
          %1716 = vdwg.mxu0
          %1717 = vmatpush.bf16.msra.mxu0 %v1640
          %1718 = vmatpush.bf16.msra.mxu0 %v1638
          %1719 = vmatpush.bf16.msra.mxu0 %v1636
          %1720 = vmatpush.bf16.msra.mxu0 %v1634
          %1721 = vmatpush.bf16.msra.mxu0 %v1632
          %1722 = vmatpush.bf16.msra.mxu0 %v1630
          %1723 = vmatpush.bf16.msra.mxu0 %v1628
          %1724 = vmatpush.bf16.msra.mxu0 %v1626
          %1725 = vmatmul.bf16.gmra.mxu0 %v1525
          %v1726 = vpop.f32.mrf.mxu0
          %v1727 = vadd.f32 0.0, %v1726
          %v1728 = vpop.f32.mrf.mxu0
          %v1729 = vadd.f32 0.0, %v1728
          %1730 = vdwg.mxu0
          %1731 = vmatpush.bf16.msra.mxu0 %v1656
          %1732 = vmatpush.bf16.msra.mxu0 %v1654
          %1733 = vmatpush.bf16.msra.mxu0 %v1652
          %1734 = vmatpush.bf16.msra.mxu0 %v1650
          %1735 = vmatpush.bf16.msra.mxu0 %v1648
          %1736 = vmatpush.bf16.msra.mxu0 %v1646
          %1737 = vmatpush.bf16.msra.mxu0 %v1644
          %1738 = vmatpush.bf16.msra.mxu0 %v1642
          %1739 = vmatmul.bf16.gmra.mxu0 %v1526
          %v1740 = vpop.f32.mrf.mxu0
          %v1741 = vadd.f32 %v1727, %v1740
          %v1742 = vpop.f32.mrf.mxu0
          %v1743 = vadd.f32 %v1729, %v1742
          %1744 = vdwg.mxu0
          %v1745 = vmul.f32 %v1713, 2.0
          %v1746 = vmul.f32 %v1741, 2.0
          %v1747 = vmul.f32 %v1715, 2.0
          %v1748 = vmul.f32 %v1743, 2.0
          %s1749 = sshra.s32 %s370, 7
          %s1750 = sand.u32 %s370, 127
          %s1751 = smul.addr %s1749, 8
          %s1752 = scalar_lea.vmem [#allocation2], %s1751
          %v1753 = vld [vmem:[%s1752] sm:$0xff]
          %v1754 = vld [vmem:[%s1752 + $0x8] sm:$0xff]
          %v1755 = vld [vmem:[%s1752 + $0x10] sm:$0xff]
          %v1756 = vld [vmem:[%s1752 + $0x18] sm:$0xff]
          %v1757 = vsub.f32 %v1745, %v1753
          %v1758 = vsub.f32 %v1746, %v1754
          %v1759 = vsub.f32 %v1747, %v1755
          %v1760 = vsub.f32 %v1748, %v1756
          %v1761 = vpack.c.bf16 %v1759, %v1757
          %v1762 = vpack.c.bf16 %v1760, %v1758
          %s1763 = scalar_lea.vmem %s6, 32
          %v1764 = vld [vmem:[%s1763] sm:$0xf]
          %v1765 = vld [vmem:[%s1763 + $0x4] sm:$0xf]
          %v1766 = vld [vmem:[%s1763 + $0x8] sm:$0xf]
          %v1767 = vld [vmem:[%s1763 + $0xc] sm:$0xf]
          %v1772 = vunpack.c.l.b16 %v1764
          %v1773 = vunpack.c.l.b16 %v1765
          %v1774 = vunpack.c.l.b16 %v1766
          %v1775 = vunpack.c.l.b16 %v1767
          %v1776 = vpack.c.b16 %v1773, %v1772
          %v1777 = vpack.c.b16 %v1775, %v1774
          %vm1778 = vcmask 130048
          %v1780 = vsel %vm1778, %v1776, 0
          %v1783 = vsel %vm1778, %v1777, 0
          %1785 = vmatpush.bf16.msra.mxu0 0
          %1786 = vmatpush.bf16.msra.mxu0 0
          %1787 = vmatpush.bf16.msra.mxu0 0
          %1788 = vmatpush.bf16.msra.mxu0 0
          %1789 = vmatpush.bf16.msra.mxu0 0
          %1790 = vmatpush.bf16.msra.mxu0 0
          %1791 = vmatpush.bf16.msra.mxu0 0
          %1792 = vmatpush.bf16.msra.mxu0 %v1761
          %1793 = vmatmul.bf16.gmra.mxu0 %v1780
          %v1794 = vpop.f32.mrf.mxu0
          %v1795 = vadd.f32 0.0, %v1794
          %v1796 = vpop.f32.mrf.mxu0
          %v1797 = vadd.f32 0.0, %v1796
          %1798 = vmatmul.bf16.gmra.mxu0 %v1783
          %v1799 = vpop.f32.mrf.mxu0
          %v1800 = vadd.f32 0.0, %v1799
          %v1801 = vpop.f32.mrf.mxu0
          %v1802 = vadd.f32 0.0, %v1801
          %1803 = vdwg.mxu0
          %1804 = vmatpush.bf16.msra.mxu0 0
          %1805 = vmatpush.bf16.msra.mxu0 0
          %1806 = vmatpush.bf16.msra.mxu0 0
          %1807 = vmatpush.bf16.msra.mxu0 0
          %1808 = vmatpush.bf16.msra.mxu0 0
          %1809 = vmatpush.bf16.msra.mxu0 0
          %1810 = vmatpush.bf16.msra.mxu0 0
          %1811 = vmatpush.bf16.msra.mxu0 %v1762
          %1812 = vmatmul.bf16.gmra.mxu0 %v1780
          %v1813 = vpop.f32.mrf.mxu0
          %v1814 = vadd.f32 0.0, %v1813
          %v1815 = vpop.f32.mrf.mxu0
          %v1816 = vadd.f32 0.0, %v1815
          %1817 = vmatmul.bf16.gmra.mxu0 %v1783
          %v1818 = vpop.f32.mrf.mxu0
          %v1819 = vadd.f32 0.0, %v1818
          %v1820 = vpop.f32.mrf.mxu0
          %v1821 = vadd.f32 0.0, %v1820
          %1822 = vdwg.mxu0
          %s1823 = smul.addr %s1749, 8
          %s1824 = scalar_lea.vmem [#allocation11], %s1823
          %v1825 = vld [vmem:[%s1824] sm:$0xff]
          %v1826 = vld [vmem:[%s1824 + $0x8] sm:$0xff]
          %v1827 = vld [vmem:[%s1824 + $0x10] sm:$0xff]
          %v1828 = vld [vmem:[%s1824 + $0x18] sm:$0xff]
          %v1829 = vld [vmem:[%s1824 + $0x20] sm:$0xff]
          %v1830 = vld [vmem:[%s1824 + $0x28] sm:$0xff]
          %v1831 = vld [vmem:[%s1824 + $0x30] sm:$0xff]
          %v1832 = vld [vmem:[%s1824 + $0x38] sm:$0xff]
          %v1833 = vadd.f32 %v1825, %v1795
          %v1834 = vadd.f32 %v1826, %v1814
          %v1835 = vadd.f32 %v1827, %v1797
          %v1836 = vadd.f32 %v1828, %v1816
          %v1837 = vadd.f32 %v1829, %v1800
          %v1838 = vadd.f32 %v1830, %v1819
          %v1839 = vadd.f32 %v1831, %v1802
          %v1840 = vadd.f32 %v1832, %v1821
          %1841 = vst [vmem:[%s1824] sm:$0xff] %v1833
          %1842 = vst [vmem:[%s1824 + $0x8] sm:$0xff] %v1834
          %1843 = vst [vmem:[%s1824 + $0x10] sm:$0xff] %v1835
          %1844 = vst [vmem:[%s1824 + $0x18] sm:$0xff] %v1836
          %1845 = vst [vmem:[%s1824 + $0x20] sm:$0xff] %v1837
          %1846 = vst [vmem:[%s1824 + $0x28] sm:$0xff] %v1838
          %1847 = vst [vmem:[%s1824 + $0x30] sm:$0xff] %v1839
          %1848 = vst [vmem:[%s1824 + $0x38] sm:$0xff] %v1840
          %p1849 = scmp.eq.s32.totalorder %s27, 0
          // Predicated region
          $region81: #{tpu_custom_call.1} parent=79 // pred_check
            %p1850 = pneg %p1849
          $region82: #{tpu_custom_call.1} parent=79 // pred_check_branch
            %1852 = sbr.rel (%p1850) target = $region84
          $region83: #{tpu_custom_call.1} parent=79 // pred_region
            %v1853 = vld [vmem:[#allocation11] sm:$0xff]
            %v1854 = vld [vmem:[#allocation11 + $0x8] sm:$0xff]
            %v1855 = vld [vmem:[#allocation11 + $0x10] sm:$0xff]
            %v1856 = vld [vmem:[#allocation11 + $0x18] sm:$0xff]
            %v1857 = vld [vmem:[#allocation11 + $0x20] sm:$0xff]
            %v1858 = vld [vmem:[#allocation11 + $0x28] sm:$0xff]
            %v1859 = vld [vmem:[#allocation11 + $0x30] sm:$0xff]
            %v1860 = vld [vmem:[#allocation11 + $0x38] sm:$0xff]
            %v1861 = vadd.f32 %v1853, %v1854
            %1862 = vadd.xlane.f32.xlu0 %v1861
            %v1863 = vpop.xlane.xlu0 %1862
            %v1864 = vadd.f32 %v1855, %v1856
            %1865 = vadd.xlane.f32.xlu0 %v1864
            %v1866 = vpop.xlane.xlu0 %1865
            %v1867 = vadd.f32 %v1857, %v1858
            %1868 = vadd.xlane.f32.xlu0 %v1867
            %v1869 = vpop.xlane.xlu0 %1868
            %v1870 = vadd.f32 %v1859, %v1860
            %1871 = vadd.xlane.f32.xlu0 %v1870
            %v1872 = vpop.xlane.xlu0 %1871
            %v1873 = vadd.f32 %v1863, 0.0
            %v1874 = vadd.f32 %v1866, 0.0
            %v1875 = vadd.f32 %v1873, %v1869
            %v1876 = vadd.f32 %v1874, %v1872
            %v1877 = vrcp.pop 512.0
            %v1878 = vmul.f32 512.0, %v1877
            %v1879 = vsub.f32 1.0, %v1878
            %v1880 = vmul.f32 %v1877, %v1879
            %v1881 = vadd.f32 %v1877, %v1880
            %vm1882 = vweird.f32 %v1877
            %v1883 = vsel %vm1882, %v1877, %v1881
            %v1884 = vmul.f32 %v1875, %v1883
            %v1885 = vmul.f32 %v1876, %v1883
            %1887 = vset.pattern.permute.xlu0 0
            %1888 = vperm.xlu0 %1887, %v1884
            %v1889 = vpop.permute.xlu0 %1888
            %1892 = vset.pattern.permute.xlu0 0
            %1893 = vperm.xlu0 %1892, %v1885
            %v1894 = vpop.permute.xlu0 %1893
            %v1896 = vsub.f32 %v1853, %v1889
            %v1897 = vsub.f32 %v1854, %v1889
            %v1898 = vsub.f32 %v1855, %v1894
            %v1899 = vsub.f32 %v1856, %v1894
            %v1900 = vsub.f32 %v1857, %v1889
            %v1901 = vsub.f32 %v1858, %v1889
            %v1902 = vsub.f32 %v1859, %v1894
            %v1903 = vsub.f32 %v1860, %v1894
            %v1904 = vmul.f32 %v1896, %v1896
            %v1905 = vmul.f32 %v1897, %v1897
            %v1906 = vmul.f32 %v1898, %v1898
            %v1907 = vmul.f32 %v1899, %v1899
            %v1908 = vmul.f32 %v1900, %v1900
            %v1909 = vmul.f32 %v1901, %v1901
            %v1910 = vmul.f32 %v1902, %v1902
            %v1911 = vmul.f32 %v1903, %v1903
            %v1912 = vadd.f32 %v1904, %v1905
            %1913 = vadd.xlane.f32.xlu0 %v1912
            %v1914 = vpop.xlane.xlu0 %1913
            %v1915 = vadd.f32 %v1906, %v1907
            %1916 = vadd.xlane.f32.xlu0 %v1915
            %v1917 = vpop.xlane.xlu0 %1916
            %v1918 = vadd.f32 %v1908, %v1909
            %1919 = vadd.xlane.f32.xlu0 %v1918
            %v1920 = vpop.xlane.xlu0 %1919
            %v1921 = vadd.f32 %v1910, %v1911
            %1922 = vadd.xlane.f32.xlu0 %v1921
            %v1923 = vpop.xlane.xlu0 %1922
            %v1924 = vadd.f32 %v1914, 0.0
            %v1925 = vadd.f32 %v1917, 0.0
            %v1926 = vadd.f32 %v1924, %v1920
            %v1927 = vadd.f32 %v1925, %v1923
            %v1928 = vmul.f32 %v1926, %v1883
            %v1929 = vmul.f32 %v1927, %v1883
            %v1930 = vld [vmem:[%s7] sm:$0xff]
            %v1931 = vld [vmem:[%s7 + $0x8] sm:$0xff]
            %v1932 = vld [vmem:[%s7 + $0x10] sm:$0xff]
            %v1933 = vld [vmem:[%s7 + $0x18] sm:$0xff]
            %v1934 = vadd.f32 %v1928, 1e-05
            %v1935 = vadd.f32 %v1929, 1e-05
            %v1936 = vrsqrt.pop %v1934
            %v1937 = vmul.f32 %v1936, %v1934
            %v1938 = vmul.f32 %v1937, %v1936
            %v1939 = vmul.f32 0.5, %v1938
            %v1940 = vsub.f32 1.5, %v1939
            %v1941 = vmul.f32 %v1936, %v1940
            %vm1942 = vweird.f32 %v1934
            %vm1943 = vweird.f32 %v1936
            %vm1944 = vmor %vm1942, %vm1943
            %v1945 = vsel %vm1944, %v1936, %v1941
            %v1946 = vrsqrt.pop %v1935
            %v1947 = vmul.f32 %v1946, %v1935
            %v1948 = vmul.f32 %v1947, %v1946
            %v1949 = vmul.f32 0.5, %v1948
            %v1950 = vsub.f32 1.5, %v1949
            %v1951 = vmul.f32 %v1946, %v1950
            %vm1952 = vweird.f32 %v1935
            %vm1953 = vweird.f32 %v1946
            %vm1954 = vmor %vm1952, %vm1953
            %v1955 = vsel %vm1954, %v1946, %v1951
            %v1956 = vmul.f32 %v1930, %v1945
            %v1957 = vmul.f32 %v1931, %v1955
            %v1958 = vmul.f32 %v1932, %v1945
            %v1959 = vmul.f32 %v1933, %v1955
            %1961 = vset.pattern.permute.xlu0 0
            %1962 = vperm.xlu0 %1961, %v1956
            %v1963 = vpop.permute.xlu0 %1962
            %1966 = vset.pattern.permute.xlu0 0
            %1967 = vperm.xlu0 %1966, %v1957
            %v1968 = vpop.permute.xlu0 %1967
            %1971 = vset.pattern.permute.xlu0 0
            %1972 = vperm.xlu0 %1971, %v1958
            %v1973 = vpop.permute.xlu0 %1972
            %1976 = vset.pattern.permute.xlu0 0
            %1977 = vperm.xlu0 %1976, %v1959
            %v1978 = vpop.permute.xlu0 %1977
            %v1980 = vmul.f32 %v1896, %v1963
            %v1981 = vmul.f32 %v1897, %v1963
            %v1982 = vmul.f32 %v1898, %v1968
            %v1983 = vmul.f32 %v1899, %v1968
            %v1984 = vmul.f32 %v1900, %v1973
            %v1985 = vmul.f32 %v1901, %v1973
            %v1986 = vmul.f32 %v1902, %v1978
            %v1987 = vmul.f32 %v1903, %v1978
            %v1988 = vld [vmem:[%s8] sm:$0xff]
            %v1989 = vld [vmem:[%s8 + $0x8] sm:$0xff]
            %v1990 = vld [vmem:[%s8 + $0x10] sm:$0xff]
            %v1991 = vld [vmem:[%s8 + $0x18] sm:$0xff]
            %1993 = vset.pattern.permute.xlu0 0
            %1994 = vperm.xlu0 %1993, %v1988
            %v1995 = vpop.permute.xlu0 %1994
            %1998 = vset.pattern.permute.xlu0 0
            %1999 = vperm.xlu0 %1998, %v1989
            %v2000 = vpop.permute.xlu0 %1999
            %2003 = vset.pattern.permute.xlu0 0
            %2004 = vperm.xlu0 %2003, %v1990
            %v2005 = vpop.permute.xlu0 %2004
            %2008 = vset.pattern.permute.xlu0 0
            %2009 = vperm.xlu0 %2008, %v1991
            %v2010 = vpop.permute.xlu0 %2009
            %v2012 = vadd.f32 %v1980, %v1995
            %v2013 = vadd.f32 %v1981, %v1995
            %v2014 = vadd.f32 %v1982, %v2000
            %v2015 = vadd.f32 %v1983, %v2000
            %v2016 = vadd.f32 %v1984, %v2005
            %v2017 = vadd.f32 %v1985, %v2005
            %v2018 = vadd.f32 %v1986, %v2010
            %v2019 = vadd.f32 %v1987, %v2010
            %v2020 = vmax.f32 %v2012, 0.0
            %v2021 = vmax.f32 %v2013, 0.0
            %v2022 = vmax.f32 %v2014, 0.0
            %v2023 = vmax.f32 %v2015, 0.0
            %v2024 = vmax.f32 %v2016, 0.0
            %v2025 = vmax.f32 %v2017, 0.0
            %v2026 = vmax.f32 %v2018, 0.0
            %v2027 = vmax.f32 %v2019, 0.0
            %2028 = vst [vmem:[#allocation11] sm:$0xff] %v2020
            %2029 = vst [vmem:[#allocation11 + $0x8] sm:$0xff] %v2021
            %2030 = vst [vmem:[#allocation11 + $0x10] sm:$0xff] %v2022
            %2031 = vst [vmem:[#allocation11 + $0x18] sm:$0xff] %v2023
            %2032 = vst [vmem:[#allocation11 + $0x20] sm:$0xff] %v2024
            %2033 = vst [vmem:[#allocation11 + $0x28] sm:$0xff] %v2025
            %2034 = vst [vmem:[#allocation11 + $0x30] sm:$0xff] %v2026
            %2035 = vst [vmem:[#allocation11 + $0x38] sm:$0xff] %v2027
          $region84: #{tpu_custom_call.1} parent=79 // pred_fallthru
            _
        $region80: #{tpu_custom_call.1} parent=55 // pred_fallthru
          _
        // Predicated region
        $region85: #{tpu_custom_call.1} parent=55 // pred_check
          %p2036 = pneg %p241
        $region86: #{tpu_custom_call.1} parent=55 // pred_check_branch
          %2038 = sbr.rel (%p2036) target = $region88
        $region87: #{tpu_custom_call.1} parent=55 // pred_region
          %2040 = vsyncadd [#allocation10], 0
          %s2041 = sshll.u32 [#allocation11], 4
          %s2042 = int_to_ptr.vmem [resolvable:$true] %s2041
          %s2043 = sshll.u32 %s9, 4
          %s2044 = int_to_ptr.hbm [resolvable:$true] %s2043
          %2049 = dma.vmem_to_hbm [thread:$0]  %s2042, 1024, %s2044, [#allocation10], 256, 256, 16
        $region88: #{tpu_custom_call.1} parent=55 // pred_fallthru
          _
        // Predicated region
        $region89: #{tpu_custom_call.1} parent=55 // pred_check
          %p2050 = pneg %p241
        $region90: #{tpu_custom_call.1} parent=55 // pred_check_branch
          %2052 = sbr.rel (%p2050) target = $region92
        $region91: #{tpu_custom_call.1} parent=55 // pred_region
          %2054 = dma.done [#allocation10], 1024
        $region92: #{tpu_custom_call.1} parent=55 // pred_fallthru
          _
      $region56: #{tpu_custom_call.1} parent=5 // pred_fallthru
        _
      %p2055 = scmp.le.s32.totalorder 2, %s17
      // Predicated region
      $region93: #{tpu_custom_call.1} parent=5 // pred_check
        %p2056 = pneg %p2055
      $region94: #{tpu_custom_call.1} parent=5 // pred_check_branch
        %2058 = sbr.rel (%p2056) target = $region96
      $region95: #{tpu_custom_call.1} parent=5 // pred_region
        %s2059 = ssub.s32 %s17, 2
      $region96: #{tpu_custom_call.1} parent=5 // pred_fallthru
        _
    $region6: #{tpu_custom_call.1} parent=1 // loop_footer
      %s21 = sadd.s32 1, %s17
    $region7: #{tpu_custom_call.1} parent=1 // loop_footer_branch
      %16 = sbr.rel target = $region3
    $region8: #{tpu_custom_call.1} parent=1 // loop_exit
      _
    %2060 = vsyncpa [#allocation9], 1
    %s2061 = scalar_lea.sflag [#allocation9], 1
    %2062 = vsyncpa %s2061, 1
    %2063 = vsyncpa [#allocation10], 1
    %s2064 = scalar_lea.sflag [#allocation10], 1
    %2065 = vsyncpa %s2064, 1

</llo_original>
